<compile_context>
chip_gen: v7x
topology: tpu7x:2x2x1
jax: 0.10.0
libtpu: 0.0.40
codegen_flags: <defaults>
</compile_context>

<pallas_src>
import numpy as np
import jax
import jax.numpy as jnp
from jax.experimental import pallas as pl
from jax.experimental.pallas import tpu as pltpu

# ----------------------------- network config ------------------------------
D_IN = 3
HIDDEN = [32, 32, 32, 32]
FEATURE_VECTOR_SIZE = 8
D_OUT = 1
SKIP_IN = (2,)
BIAS_INIT = 1.0
SQRT2 = float(np.sqrt(2.0))

DIMS = [D_IN] + HIDDEN + [FEATURE_VECTOR_SIZE]      # [3, 32, 32, 32, 32, 8]
NUM_LAYERS = len(DIMS)                              # 6
OUT_DIM_TOTAL = D_OUT + FEATURE_VECTOR_SIZE         # 9

# lane packing: 4 points per 128-lane row, one 32-lane slot per point
SLOT = 32
PACK = 4
LANES = SLOT * PACK                                 # 128
MAX_TILE_ROWS = 2048                                # 8192 points per grid step
MIN_TILE_ROWS = 8                                   # sublane alignment


def _round_up(x, m):
    return (x + m - 1) // m * m


# ------------------------------ parameter init -----------------------------
def build_params(key):
    """Deterministic geometric-style init (weight_norm is an identity at init,
    so effective weights equal the raw initialized weights)."""
    params = []
    for l in range(NUM_LAYERS - 1):
        in_dim = DIMS[l]
        if l + 1 in SKIP_IN:
            out_dim = DIMS[l + 1] - DIMS[0]
        else:
            out_dim = DIMS[l + 1]
        key, kw = jax.random.split(key)
        if l == NUM_LAYERS - 2:
            w = (np.sqrt(np.pi) / np.sqrt(DIMS[l])
                 + 1e-4 * jax.random.normal(kw, (in_dim, out_dim), jnp.float32))
            b = jnp.full((1, out_dim), -BIAS_INIT, jnp.float32)
        else:
            w = (np.sqrt(2.0) / np.sqrt(out_dim)
                 * jax.random.normal(kw, (in_dim, out_dim), jnp.float32))
            b = jnp.zeros((1, out_dim), jnp.float32)
        params.append((w, b))

    # sdf_linear: Linear(dims[-2], d_out)
    key, kw = jax.random.split(key)
    w_sdf = (np.sqrt(np.pi) / np.sqrt(DIMS[-2])
             + 1e-4 * jax.random.normal(kw, (DIMS[-2], D_OUT), jnp.float32))
    b_sdf = jnp.full((1, D_OUT), -BIAS_INIT, jnp.float32)
    return params, (w_sdf, b_sdf)


# ----------------------- wrapper-side weight packing -------------------------
def _block_diag4(w):
    """4 copies of `w` placed at the top-left of the four 32-lane diagonal
    slots of a (128, 128) matrix (unused rows/cols stay zero)."""
    kin, kout = w.shape
    out = jnp.zeros((LANES, LANES), jnp.float32)
    for s in range(PACK):
        out = out.at[s * SLOT:s * SLOT + kin, s * SLOT:s * SLOT + kout].set(w)
    return out


def _tile_bias4(b):
    """(1, d) bias -> zero-padded 32-lane slot, replicated 4x -> (1, 128)."""
    d = b.shape[-1]
    slot = jnp.zeros((1, SLOT), jnp.float32).at[:, :d].set(b)
    return jnp.tile(slot, (1, PACK))


def pack_params(params, sdf_params):
    """Exact algebraic repack: head fusion, skip split, 1/sqrt(2) fold,
    block-diagonal 4-point lane packing."""
    (w0, b0), (w1, b1), (w2, b2), (w3, b3), (w4, b4) = params
    w_sdf, b_sdf = sdf_params
    inv_s2 = 1.0 / SQRT2

    h_skip = DIMS[2] - DIMS[0]               # 29 hidden channels at the skip
    w2h = w2[:h_skip, :] * inv_s2            # hidden part of the skip matmul
    w2i = w2[h_skip:, :] * inv_s2            # input  part of the skip matmul

    w_head = jnp.concatenate([w_sdf, w4], axis=1)   # (32, 9): [sdf | feature]
    b_head = jnp.concatenate([b_sdf, b4], axis=1)   # (1, 9)

    return (
        _block_diag4(w0), _tile_bias4(b0),
        _block_diag4(w1), _tile_bias4(b1),
        _block_diag4(w2h), _block_diag4(w2i), _tile_bias4(b2),
        _block_diag4(w3), _tile_bias4(b3),
        _block_diag4(w_head), _tile_bias4(b_head),
    )


# --------------------------------- kernel -----------------------------------
def _softplus_beta100(x):
    # PyTorch Softplus(beta=100, threshold=20): linear when beta*x > 20.
    z = 100.0 * x
    safe = jnp.minimum(z, 20.0)
    return jnp.where(z > 20.0, x, jnp.log1p(jnp.exp(safe)) * (1.0 / 100.0))


def implicit_net_kernel(x_ref,
                        w0_ref, b0_ref,
                        w1_ref, b1_ref,
                        w2h_ref, w2i_ref, b2_ref,
                        w3_ref, b3_ref,
                        wh_ref, bh_ref,
                        out_ref):
    x = x_ref[...]                                           # (tile_rows, 128)

    # l = 0
    h = _softplus_beta100(
        jnp.dot(x, w0_ref[...], preferred_element_type=jnp.float32) + b0_ref[...])
    # l = 1 (output has 29 valid lanes per slot; padded lanes are killed by
    #        the zero rows of w2h below)
    h = _softplus_beta100(
        jnp.dot(h, w1_ref[...], preferred_element_type=jnp.float32) + b1_ref[...])
    # l = 2 (skip): cat([h, input], -1)/sqrt(2) done as two matmuls with the
    #        1/sqrt(2) folded into the packed weights — no concatenate.
    h = _softplus_beta100(
        jnp.dot(h, w2h_ref[...], preferred_element_type=jnp.float32)
        + jnp.dot(x, w2i_ref[...], preferred_element_type=jnp.float32)
        + b2_ref[...])
    # l = 3
    h = _softplus_beta100(
        jnp.dot(h, w3_ref[...], preferred_element_type=jnp.float32) + b3_ref[...])
    # l = 4: fused [sdf | feature] head, no activation; lane-dense 128-wide store
    out_ref[...] = (jnp.dot(h, wh_ref[...], preferred_element_type=jnp.float32)
                    + bh_ref[...]).astype(out_ref.dtype)


# -------------------------------- wrapper ------------------------------------
def _choose_tile_rows(rows):
    # Aim for >= 8 grid steps (megacore / v7x 2-TC sharding) while capping the
    # per-step tile; tile_rows must be a multiple of 8 (sublane alignment).
    t = _round_up(max(-(-rows // 8), MIN_TILE_ROWS), MIN_TILE_ROWS)
    return min(t, MAX_TILE_ROWS)


def implicit_network_forward(x, params, sdf_params):
    N, d_in = x.shape
    assert d_in == D_IN

    packed = pack_params(params, sdf_params)

    rows = -(-N // PACK)
    tile_rows = _choose_tile_rows(rows)
    rows_pad = _round_up(rows, tile_rows)
    n_pad = rows_pad * PACK

    # pad points to (n_pad, 32) slots and pack 4 points per 128-lane row
    x_slot = jnp.zeros((n_pad, SLOT), jnp.float32).at[:N, :D_IN].set(
        x.astype(jnp.float32))
    x_packed = x_slot.reshape(rows_pad, LANES)

    grid = (rows_pad // tile_rows,)

    def full_spec(arr):
        # small parameter array resident in VMEM for every grid step
        return pl.BlockSpec(arr.shape, lambda i: (0,) * arr.ndim)

    in_specs = [pl.BlockSpec((tile_rows, LANES), lambda i: (i, 0))]
    in_specs += [full_spec(p) for p in packed]
    out_spec = pl.BlockSpec((tile_rows, LANES), lambda i: (i, 0))

    out_packed = pl.pallas_call(
        implicit_net_kernel,
        out_shape=jax.ShapeDtypeStruct((rows_pad, LANES), jnp.float32),
        grid_spec=pltpu.PrefetchScalarGridSpec(
            num_scalar_prefetch=0,
            grid=grid,
            in_specs=in_specs,
            out_specs=out_spec,
        ),
        compiler_params=pltpu.CompilerParams(
            dimension_semantics=("parallel",),
            vmem_limit_bytes=32 * 1024 * 1024),
    )(x_packed, *packed)

    # unpack: (rows_pad, 128) -> (n_pad, 32) -> (N, 9)
    return out_packed.reshape(n_pad, SLOT)[:N, :OUT_DIM_TOTAL]


# ------------------------------ pure-JAX reference ---------------------------
def implicit_network_ref(x, params, sdf_params):
    (w0, b0), (w1, b1), (w2, b2), (w3, b3), (w4, b4) = params
    w_sdf, b_sdf = sdf_params
    inp = x
    h = _softplus_beta100(inp @ w0 + b0)
    h = _softplus_beta100(h @ w1 + b1)
    h = jnp.concatenate([h, inp], axis=1) / SQRT2
    h = _softplus_beta100(h @ w2 + b2)
    h = _softplus_beta100(h @ w3 + b3)
    sdf = h @ w_sdf + b_sdf
    feat = h @ w4 + b4
    return jnp.concatenate([sdf, feat], axis=1)


# ----------------------------------- main ------------------------------------
if __name__ == "__main__":
    key = jax.random.PRNGKey(0)
    key, kx, kp = jax.random.split(key, 3)

    N = 333  # deliberately not a multiple of the pack/tile to exercise padding
    x = jax.random.normal(kx, (N, D_IN), jnp.float32)

    params, sdf_params = build_params(kp)

    out = implicit_network_forward(x, params, sdf_params)
    out = jax.block_until_ready(out)

    ref = implicit_network_ref(x, params, sdf_params)
    np_out = np.asarray(out)
    np_ref = np.asarray(ref)
    assert np_out.shape == (N, OUT_DIM_TOTAL)
    assert np.allclose(np_out, np_ref, rtol=1e-4, atol=1e-4), (
        np.abs(np_out - np_ref).max())

    print("KERNEL_OK")
</pallas_src>

<mosaic_0001>
module attributes {stable_mosaic.version = 11 : i64} {
  func.func @implicit_net_kernel(%arg0: i32, %arg1: memref<16x128xf32, #tpu.memory_space<vmem>>, %arg2: memref<128x128xf32, #tpu.memory_space<vmem>>, %arg3: memref<1x128xf32, #tpu.memory_space<vmem>>, %arg4: memref<128x128xf32, #tpu.memory_space<vmem>>, %arg5: memref<1x128xf32, #tpu.memory_space<vmem>>, %arg6: memref<128x128xf32, #tpu.memory_space<vmem>>, %arg7: memref<128x128xf32, #tpu.memory_space<vmem>>, %arg8: memref<1x128xf32, #tpu.memory_space<vmem>>, %arg9: memref<128x128xf32, #tpu.memory_space<vmem>>, %arg10: memref<1x128xf32, #tpu.memory_space<vmem>>, %arg11: memref<128x128xf32, #tpu.memory_space<vmem>>, %arg12: memref<1x128xf32, #tpu.memory_space<vmem>>, %arg13: memref<16x128xf32, #tpu.memory_space<vmem>>) attributes {dimension_semantics = [#tpu.dimension_semantics<parallel>], iteration_bounds = array<i64: 6>, scalar_prefetch = 0 : i64, scratch_operands = 0 : i64, tpu.core_type = #tpu.core_type<tc>, window_params = [{transform_indices = @transform_0, window_bounds = array<i64: 16, 128>}, {pipeline_mode = #tpu.pipeline_mode<synchronous>, transform_indices = @transform_1, window_bounds = array<i64: 128, 128>}, {pipeline_mode = #tpu.pipeline_mode<synchronous>, transform_indices = @transform_2, window_bounds = array<i64: 1, 128>}, {pipeline_mode = #tpu.pipeline_mode<synchronous>, transform_indices = @transform_3, window_bounds = array<i64: 128, 128>}, {pipeline_mode = #tpu.pipeline_mode<synchronous>, transform_indices = @transform_4, window_bounds = array<i64: 1, 128>}, {pipeline_mode = #tpu.pipeline_mode<synchronous>, transform_indices = @transform_5, window_bounds = array<i64: 128, 128>}, {pipeline_mode = #tpu.pipeline_mode<synchronous>, transform_indices = @transform_6, window_bounds = array<i64: 128, 128>}, {pipeline_mode = #tpu.pipeline_mode<synchronous>, transform_indices = @transform_7, window_bounds = array<i64: 1, 128>}, {pipeline_mode = #tpu.pipeline_mode<synchronous>, transform_indices = @transform_8, window_bounds = array<i64: 128, 128>}, {pipeline_mode = #tpu.pipeline_mode<synchronous>, transform_indices = @transform_9, window_bounds = array<i64: 1, 128>}, {pipeline_mode = #tpu.pipeline_mode<synchronous>, transform_indices = @transform_10, window_bounds = array<i64: 128, 128>}, {pipeline_mode = #tpu.pipeline_mode<synchronous>, transform_indices = @transform_11, window_bounds = array<i64: 1, 128>}, {transform_indices = @transform_12, window_bounds = array<i64: 16, 128>}]} {
    %c0 = arith.constant 0 : index
    %c0_0 = arith.constant 0 : index
    %0 = vector.load %arg1[%c0, %c0_0] : memref<16x128xf32, #tpu.memory_space<vmem>>, vector<16x128xf32>
    %c0_1 = arith.constant 0 : index
    %c0_2 = arith.constant 0 : index
    %1 = vector.load %arg2[%c0_1, %c0_2] : memref<128x128xf32, #tpu.memory_space<vmem>>, vector<128x128xf32>
    %cst = arith.constant dense<0.000000e+00> : vector<16x128xf32>
    %2 = tpu.matmul %0, %1, %cst {dimension_numbers = #tpu.dot_dimension_numbers<[1], [0], [0], [1], [0, 0, 1, 1], [], []>} : vector<16x128xf32>, vector<128x128xf32>, vector<16x128xf32> -> vector<16x128xf32>
    %c0_3 = arith.constant 0 : index
    %c0_4 = arith.constant 0 : index
    %3 = vector.load %arg3[%c0_3, %c0_4] : memref<1x128xf32, #tpu.memory_space<vmem>>, vector<1x128xf32>
    %4 = vector.broadcast %3 : vector<1x128xf32> to vector<16x128xf32>
    %5 = arith.addf %2, %4 : vector<16x128xf32>
    %cst_5 = arith.constant 1.000000e+02 : f32
    %6 = vector.broadcast %cst_5 : f32 to vector<16x128xf32>
    %7 = arith.mulf %6, %5 : vector<16x128xf32>
    %cst_6 = arith.constant 2.000000e+01 : f32
    %8 = vector.broadcast %cst_6 : f32 to vector<16x128xf32>
    %9 = arith.minimumf %7, %8 : vector<16x128xf32>
    %cst_7 = arith.constant 2.000000e+01 : f32
    %10 = vector.broadcast %cst_7 : f32 to vector<16x128xf32>
    %11 = arith.cmpf ogt, %7, %10 : vector<16x128xf32>
    %12 = math.exp %9 : vector<16x128xf32>
    %13 = math.log1p %12 : vector<16x128xf32>
    %cst_8 = arith.constant 0.00999999977 : f32
    %14 = vector.broadcast %cst_8 : f32 to vector<16x128xf32>
    %15 = arith.mulf %13, %14 : vector<16x128xf32>
    %16 = arith.select %11, %5, %15 : vector<16x128xi1>, vector<16x128xf32>
    %c0_9 = arith.constant 0 : index
    %c0_10 = arith.constant 0 : index
    %17 = vector.load %arg4[%c0_9, %c0_10] : memref<128x128xf32, #tpu.memory_space<vmem>>, vector<128x128xf32>
    %cst_11 = arith.constant dense<0.000000e+00> : vector<16x128xf32>
    %18 = tpu.matmul %16, %17, %cst_11 {dimension_numbers = #tpu.dot_dimension_numbers<[1], [0], [0], [1], [0, 0, 1, 1], [], []>} : vector<16x128xf32>, vector<128x128xf32>, vector<16x128xf32> -> vector<16x128xf32>
    %c0_12 = arith.constant 0 : index
    %c0_13 = arith.constant 0 : index
    %19 = vector.load %arg5[%c0_12, %c0_13] : memref<1x128xf32, #tpu.memory_space<vmem>>, vector<1x128xf32>
    %20 = vector.broadcast %19 : vector<1x128xf32> to vector<16x128xf32>
    %21 = arith.addf %18, %20 : vector<16x128xf32>
    %cst_14 = arith.constant 1.000000e+02 : f32
    %22 = vector.broadcast %cst_14 : f32 to vector<16x128xf32>
    %23 = arith.mulf %22, %21 : vector<16x128xf32>
    %cst_15 = arith.constant 2.000000e+01 : f32
    %24 = vector.broadcast %cst_15 : f32 to vector<16x128xf32>
    %25 = arith.minimumf %23, %24 : vector<16x128xf32>
    %cst_16 = arith.constant 2.000000e+01 : f32
    %26 = vector.broadcast %cst_16 : f32 to vector<16x128xf32>
    %27 = arith.cmpf ogt, %23, %26 : vector<16x128xf32>
    %28 = math.exp %25 : vector<16x128xf32>
    %29 = math.log1p %28 : vector<16x128xf32>
    %cst_17 = arith.constant 0.00999999977 : f32
    %30 = vector.broadcast %cst_17 : f32 to vector<16x128xf32>
    %31 = arith.mulf %29, %30 : vector<16x128xf32>
    %32 = arith.select %27, %21, %31 : vector<16x128xi1>, vector<16x128xf32>
    %c0_18 = arith.constant 0 : index
    %c0_19 = arith.constant 0 : index
    %33 = vector.load %arg6[%c0_18, %c0_19] : memref<128x128xf32, #tpu.memory_space<vmem>>, vector<128x128xf32>
    %cst_20 = arith.constant dense<0.000000e+00> : vector<16x128xf32>
    %34 = tpu.matmul %32, %33, %cst_20 {dimension_numbers = #tpu.dot_dimension_numbers<[1], [0], [0], [1], [0, 0, 1, 1], [], []>} : vector<16x128xf32>, vector<128x128xf32>, vector<16x128xf32> -> vector<16x128xf32>
    %c0_21 = arith.constant 0 : index
    %c0_22 = arith.constant 0 : index
    %35 = vector.load %arg7[%c0_21, %c0_22] : memref<128x128xf32, #tpu.memory_space<vmem>>, vector<128x128xf32>
    %cst_23 = arith.constant dense<0.000000e+00> : vector<16x128xf32>
    %36 = tpu.matmul %0, %35, %cst_23 {dimension_numbers = #tpu.dot_dimension_numbers<[1], [0], [0], [1], [0, 0, 1, 1], [], []>} : vector<16x128xf32>, vector<128x128xf32>, vector<16x128xf32> -> vector<16x128xf32>
    %37 = arith.addf %34, %36 : vector<16x128xf32>
    %c0_24 = arith.constant 0 : index
    %c0_25 = arith.constant 0 : index
    %38 = vector.load %arg8[%c0_24, %c0_25] : memref<1x128xf32, #tpu.memory_space<vmem>>, vector<1x128xf32>
    %39 = vector.broadcast %38 : vector<1x128xf32> to vector<16x128xf32>
    %40 = arith.addf %37, %39 : vector<16x128xf32>
    %cst_26 = arith.constant 1.000000e+02 : f32
    %41 = vector.broadcast %cst_26 : f32 to vector<16x128xf32>
    %42 = arith.mulf %41, %40 : vector<16x128xf32>
    %cst_27 = arith.constant 2.000000e+01 : f32
    %43 = vector.broadcast %cst_27 : f32 to vector<16x128xf32>
    %44 = arith.minimumf %42, %43 : vector<16x128xf32>
    %cst_28 = arith.constant 2.000000e+01 : f32
    %45 = vector.broadcast %cst_28 : f32 to vector<16x128xf32>
    %46 = arith.cmpf ogt, %42, %45 : vector<16x128xf32>
    %47 = math.exp %44 : vector<16x128xf32>
    %48 = math.log1p %47 : vector<16x128xf32>
    %cst_29 = arith.constant 0.00999999977 : f32
    %49 = vector.broadcast %cst_29 : f32 to vector<16x128xf32>
    %50 = arith.mulf %48, %49 : vector<16x128xf32>
    %51 = arith.select %46, %40, %50 : vector<16x128xi1>, vector<16x128xf32>
    %c0_30 = arith.constant 0 : index
    %c0_31 = arith.constant 0 : index
    %52 = vector.load %arg9[%c0_30, %c0_31] : memref<128x128xf32, #tpu.memory_space<vmem>>, vector<128x128xf32>
    %cst_32 = arith.constant dense<0.000000e+00> : vector<16x128xf32>
    %53 = tpu.matmul %51, %52, %cst_32 {dimension_numbers = #tpu.dot_dimension_numbers<[1], [0], [0], [1], [0, 0, 1, 1], [], []>} : vector<16x128xf32>, vector<128x128xf32>, vector<16x128xf32> -> vector<16x128xf32>
    %c0_33 = arith.constant 0 : index
    %c0_34 = arith.constant 0 : index
    %54 = vector.load %arg10[%c0_33, %c0_34] : memref<1x128xf32, #tpu.memory_space<vmem>>, vector<1x128xf32>
    %55 = vector.broadcast %54 : vector<1x128xf32> to vector<16x128xf32>
    %56 = arith.addf %53, %55 : vector<16x128xf32>
    %cst_35 = arith.constant 1.000000e+02 : f32
    %57 = vector.broadcast %cst_35 : f32 to vector<16x128xf32>
    %58 = arith.mulf %57, %56 : vector<16x128xf32>
    %cst_36 = arith.constant 2.000000e+01 : f32
    %59 = vector.broadcast %cst_36 : f32 to vector<16x128xf32>
    %60 = arith.minimumf %58, %59 : vector<16x128xf32>
    %cst_37 = arith.constant 2.000000e+01 : f32
    %61 = vector.broadcast %cst_37 : f32 to vector<16x128xf32>
    %62 = arith.cmpf ogt, %58, %61 : vector<16x128xf32>
    %63 = math.exp %60 : vector<16x128xf32>
    %64 = math.log1p %63 : vector<16x128xf32>
    %cst_38 = arith.constant 0.00999999977 : f32
    %65 = vector.broadcast %cst_38 : f32 to vector<16x128xf32>
    %66 = arith.mulf %64, %65 : vector<16x128xf32>
    %67 = arith.select %62, %56, %66 : vector<16x128xi1>, vector<16x128xf32>
    %c0_39 = arith.constant 0 : index
    %c0_40 = arith.constant 0 : index
    %68 = vector.load %arg11[%c0_39, %c0_40] : memref<128x128xf32, #tpu.memory_space<vmem>>, vector<128x128xf32>
    %cst_41 = arith.constant dense<0.000000e+00> : vector<16x128xf32>
    %69 = tpu.matmul %67, %68, %cst_41 {dimension_numbers = #tpu.dot_dimension_numbers<[1], [0], [0], [1], [0, 0, 1, 1], [], []>} : vector<16x128xf32>, vector<128x128xf32>, vector<16x128xf32> -> vector<16x128xf32>
    %c0_42 = arith.constant 0 : index
    %c0_43 = arith.constant 0 : index
    %70 = vector.load %arg12[%c0_42, %c0_43] : memref<1x128xf32, #tpu.memory_space<vmem>>, vector<1x128xf32>
    %71 = vector.broadcast %70 : vector<1x128xf32> to vector<16x128xf32>
    %72 = arith.addf %69, %71 : vector<16x128xf32>
    %c0_44 = arith.constant 0 : index
    %c0_45 = arith.constant 0 : index
    %73 = vector.load %arg13[%c0_44, %c0_45] : memref<16x128xf32, #tpu.memory_space<vmem>>, vector<16x128xf32>
    tpu.vector_store %arg13[%c0_44, %c0_45], %72 {strides = array<i32>} : memref<16x128xf32, #tpu.memory_space<vmem>>, vector<16x128xf32>,
    return
  }
  func.func @transform_0(%arg0: i32) -> (i32, i32) {
    %c0_i32 = arith.constant 0 : i32
    %c0_i32_0 = arith.constant 0 : i32
    return %arg0, %c0_i32 : i32, i32
  }
  func.func @transform_1(%arg0: i32) -> (i32, i32) {
    %c0_i32 = arith.constant 0 : i32
    %c0_i32_0 = arith.constant 0 : i32
    %c0_i32_1 = arith.constant 0 : i32
    return %c0_i32, %c0_i32_0 : i32, i32
  }
  func.func @transform_2(%arg0: i32) -> (i32, i32) {
    %c0_i32 = arith.constant 0 : i32
    %c0_i32_0 = arith.constant 0 : i32
    %c0_i32_1 = arith.constant 0 : i32
    return %c0_i32, %c0_i32_0 : i32, i32
  }
  func.func @transform_3(%arg0: i32) -> (i32, i32) {
    %c0_i32 = arith.constant 0 : i32
    %c0_i32_0 = arith.constant 0 : i32
    %c0_i32_1 = arith.constant 0 : i32
    return %c0_i32, %c0_i32_0 : i32, i32
  }
  func.func @transform_4(%arg0: i32) -> (i32, i32) {
    %c0_i32 = arith.constant 0 : i32
    %c0_i32_0 = arith.constant 0 : i32
    %c0_i32_1 = arith.constant 0 : i32
    return %c0_i32, %c0_i32_0 : i32, i32
  }
  func.func @transform_5(%arg0: i32) -> (i32, i32) {
    %c0_i32 = arith.constant 0 : i32
    %c0_i32_0 = arith.constant 0 : i32
    %c0_i32_1 = arith.constant 0 : i32
    return %c0_i32, %c0_i32_0 : i32, i32
  }
  func.func @transform_6(%arg0: i32) -> (i32, i32) {
    %c0_i32 = arith.constant 0 : i32
    %c0_i32_0 = arith.constant 0 : i32
    %c0_i32_1 = arith.constant 0 : i32
    return %c0_i32, %c0_i32_0 : i32, i32
  }
  func.func @transform_7(%arg0: i32) -> (i32, i32) {
    %c0_i32 = arith.constant 0 : i32
    %c0_i32_0 = arith.constant 0 : i32
    %c0_i32_1 = arith.constant 0 : i32
    return %c0_i32, %c0_i32_0 : i32, i32
  }
  func.func @transform_8(%arg0: i32) -> (i32, i32) {
    %c0_i32 = arith.constant 0 : i32
    %c0_i32_0 = arith.constant 0 : i32
    %c0_i32_1 = arith.constant 0 : i32
    return %c0_i32, %c0_i32_0 : i32, i32
  }
  func.func @transform_9(%arg0: i32) -> (i32, i32) {
    %c0_i32 = arith.constant 0 : i32
    %c0_i32_0 = arith.constant 0 : i32
    %c0_i32_1 = arith.constant 0 : i32
    return %c0_i32, %c0_i32_0 : i32, i32
  }
  func.func @transform_10(%arg0: i32) -> (i32, i32) {
    %c0_i32 = arith.constant 0 : i32
    %c0_i32_0 = arith.constant 0 : i32
    %c0_i32_1 = arith.constant 0 : i32
    return %c0_i32, %c0_i32_0 : i32, i32
  }
  func.func @transform_11(%arg0: i32) -> (i32, i32) {
    %c0_i32 = arith.constant 0 : i32
    %c0_i32_0 = arith.constant 0 : i32
    %c0_i32_1 = arith.constant 0 : i32
    return %c0_i32, %c0_i32_0 : i32, i32
  }
  func.func @transform_12(%arg0: i32) -> (i32, i32) {
    %c0_i32 = arith.constant 0 : i32
    %c0_i32_0 = arith.constant 0 : i32
    return %arg0, %c0_i32 : i32, i32
  }
}

</mosaic_0001>

<llo_original>
// kernel: tpu_custom_call.1
$region0: #{tpu_custom_call.1}
  #allocation0 [shape = 'u32[]', space=smem, size = 0x4, offset = 0x4, fixed_abs, tag = 'smem constant byte address 0x4 - core index']
  #allocation1 [shape = 'u32[144,128]{1,0:T(1,128)}', space=vmem, size = 0x12000, scoped, tag = 'internal scratch']
  %s0 = inlined_call_operand.hbm [shape: f32[96,128], index: 0, kind: input, shape index: {}]
  %s1 = inlined_call_operand.hbm [shape: f32[128,128], index: 1, kind: input, shape index: {}]
  %s2 = inlined_call_operand.vmem [shape: f32[1,128], index: 2, kind: input, shape index: {}]
  %s3 = inlined_call_operand.hbm [shape: f32[128,128], index: 3, kind: input, shape index: {}]
  %s4 = inlined_call_operand.vmem [shape: f32[1,128], index: 4, kind: input, shape index: {}]
  %s5 = inlined_call_operand.hbm [shape: f32[128,128], index: 5, kind: input, shape index: {}]
  %s6 = inlined_call_operand.hbm [shape: f32[128,128], index: 6, kind: input, shape index: {}]
  %s7 = inlined_call_operand.vmem [shape: f32[1,128], index: 7, kind: input, shape index: {}]
  %s8 = inlined_call_operand.hbm [shape: f32[128,128], index: 8, kind: input, shape index: {}]
  %s9 = inlined_call_operand.vmem [shape: f32[1,128], index: 9, kind: input, shape index: {}]
  %s10 = inlined_call_operand.hbm [shape: f32[128,128], index: 10, kind: input, shape index: {}]
  %s11 = inlined_call_operand.vmem [shape: f32[1,128], index: 11, kind: input, shape index: {}]
  %s12 = inlined_call_operand.hbm [shape: f32[96,128], index: 12, kind: output, shape index: {}]
  %s13 = sld [smem:[#allocation0]]
  $region109: #{tpu_custom_call.1} parent=0
    _
  %s15 = ssub.s32 1, %s13
  %s16 = scalar_select 0, %s15, %s13
  $region1: #{tpu_custom_call.1} parent=0
    #allocation2 [shape = 'u8[16384]{0}', space=vmem, size = 0x4000, scoped, tag = 'input window, operand 0']
    #allocation3 [shape = 's32[2]{0}', space=sflag, size = 0x8, scoped, tag = 'scoped memory for tpu_custom_call.1']
    #allocation4 [shape = 's32[2]{0}', space=sflag, size = 0x8, scoped, tag = 'scoped memory for tpu_custom_call.1']
    #allocation5 [shape = 'u8[65536]{0}', space=vmem, size = 0x10000, scoped, tag = 'input window, operand 1, single buffered']
    #allocation6 [shape = 's32[1]{0}', space=sflag, size = 0x4, scoped, tag = 'scoped memory for tpu_custom_call.1']
    #allocation7 [shape = 'u8[65536]{0}', space=vmem, size = 0x10000, scoped, tag = 'input window, operand 3, single buffered']
    #allocation8 [shape = 'u8[65536]{0}', space=vmem, size = 0x10000, scoped, tag = 'input window, operand 5, single buffered']
    #allocation9 [shape = 's32[1]{0}', space=sflag, size = 0x4, scoped, tag = 'scoped memory for tpu_custom_call.1']
    #allocation10 [shape = 'u8[65536]{0}', space=vmem, size = 0x10000, scoped, tag = 'input window, operand 6, single buffered']
    #allocation11 [shape = 'u8[65536]{0}', space=vmem, size = 0x10000, scoped, tag = 'input window, operand 8, single buffered']
    #allocation12 [shape = 's32[1]{0}', space=sflag, size = 0x4, scoped, tag = 'scoped memory for tpu_custom_call.1']
    #allocation13 [shape = 'u8[65536]{0}', space=vmem, size = 0x10000, scoped, tag = 'input window, operand 10, single buffered']
    #allocation14 [shape = 'u8[16384]{0}', space=vmem, size = 0x4000, scoped, tag = 'output window, operand 0']
    %17 = vsyncpa [#allocation3], 0
    %s18 = scalar_lea.sflag [#allocation3], 1
    %19 = vsyncpa %s18, 0
    %20 = vsyncpa [#allocation6], 0
    %21 = vsyncpa [#allocation9], 0
    %22 = vsyncpa [#allocation12], 0
    %23 = vsyncpa [#allocation4], 0
    %s24 = scalar_lea.sflag [#allocation4], 1
    %25 = vsyncpa %s24, 0
    loop: start=0, step=1, limit=8
    $region2: #{tpu_custom_call.1} parent=1 // loop_pre_header
      _
    $region3: #{tpu_custom_call.1} parent=1 // loop_header
      %s27 = sphi 0, %s31
      %p28 = scmp.ge.s32.totalorder %s27, 8
      %s37 = sphi 0, %s39
      %s40 = sphi 0, %s37
      %s41 = sphi 0, %s40
      %s57 = sphi 0, %s41
      %s61 = sphi 0, %s61
      %s63 = sphi 0, %s61
      %s64 = sphi 0, %s63
      %s78 = sphi 0, %s64
      %s82 = sphi 0, %s82
      %s84 = sphi 0, %s82
      %s85 = sphi 0, %s84
      %s99 = sphi 0, %s85
      %s103 = sphi 0, %s103
      %s105 = sphi 0, %s103
      %s106 = sphi 0, %s105
      %s120 = sphi 0, %s106
      %s124 = sphi 0, %s124
      %s126 = sphi 0, %s124
      %s127 = sphi 0, %s126
      %s141 = sphi 0, %s127
      %s145 = sphi 0, %s145
      %s147 = sphi 0, %s145
      %s148 = sphi 0, %s147
      %s162 = sphi 0, %s148
      %s166 = sphi 0, %s166
      %s168 = sphi 0, %s166
      %s169 = sphi 0, %s168
      %s183 = sphi 0, %s169
      %s187 = sphi 0, %s187
      %s189 = sphi 0, %s187
      %s190 = sphi 0, %s189
      %s204 = sphi 0, %s190
      %s208 = sphi 0, %s208
      %s210 = sphi 0, %s208
      %s211 = sphi 0, %s210
      %s225 = sphi 0, %s211
      %s229 = sphi 0, %s229
      %s231 = sphi 0, %s229
      %s232 = sphi 0, %s231
      %s246 = sphi 0, %s232
      %s250 = sphi 0, %s250
      %s252 = sphi 0, %s250
      %s253 = sphi 0, %s252
      %s267 = sphi 0, %s253
      %s271 = sphi 0, %s271
      %s273 = sphi 0, %s271
      %s274 = sphi 0, %s273
      %s288 = sphi 0, %s274
      %s294 = sphi 0, %s296
      %s297 = sphi 0, %s294
      %s298 = sphi 0, %s297
      %s314 = sphi 0, %s298
    $region4: #{tpu_custom_call.1} parent=1 // loop_header_branch
      %30 = sbr.rel (%p28) target = $region8
    $region5: #{tpu_custom_call.1} parent=1 // loop_body
      %s32 = ssub.s32 %s27, 1
      %s33 = ssub.s32 %s27, 2
      %s34 = sadd.s32 %s27, 1
      %s35 = ssub.s32 %s27, %s34
      %p36 = scmp.eq.s32.totalorder %s35, 0
      %s38 = sadd.s32 %s37, 1
      %s39 = scalar_select %p36, %s37, %s38
      %p42 = pneg %p36
      %p43 = scmp.eq.s32.totalorder %s27, 5
      %p44 = por %p42, %p43
      %p45 = scmp.ne.s32.totalorder %s37, %s40
      %p46 = scmp.eq.s32.totalorder %s27, 0
      %p47 = por %p45, %p46
      %p48 = scmp.ne.s32.totalorder %s37, %s40
      %p49 = scmp.eq.s32.totalorder %s32, 5
      %p50 = por %p48, %p49
      %p51 = scmp.ne.s32.totalorder %s40, %s41
      %p52 = scmp.eq.s32.totalorder %s32, 0
      %p53 = por %p51, %p52
      %p54 = scmp.ne.s32.totalorder %s40, %s41
      %p55 = scmp.eq.s32.totalorder %s33, 5
      %p56 = por %p54, %p55
      %p58 = scmp.ne.s32.totalorder %s41, %s57
      %p59 = scmp.eq.s32.totalorder %s33, 0
      %p60 = por %p58, %p59
      %s62 = sadd.s32 %s61, 1
      %p65 = scmp.eq.s32.totalorder %s27, 5
      %p66 = scmp.ne.s32.totalorder %s61, %s63
      %p67 = scmp.eq.s32.totalorder %s27, 0
      %p68 = por %p66, %p67
      %p69 = scmp.ne.s32.totalorder %s61, %s63
      %p70 = scmp.eq.s32.totalorder %s32, 5
      %p71 = por %p69, %p70
      %p72 = scmp.ne.s32.totalorder %s63, %s64
      %p73 = scmp.eq.s32.totalorder %s32, 0
      %p74 = por %p72, %p73
      %p75 = scmp.ne.s32.totalorder %s63, %s64
      %p76 = scmp.eq.s32.totalorder %s33, 5
      %p77 = por %p75, %p76
      %p79 = scmp.ne.s32.totalorder %s64, %s78
      %p80 = scmp.eq.s32.totalorder %s33, 0
      %p81 = por %p79, %p80
      %s83 = sadd.s32 %s82, 1
      %p86 = scmp.eq.s32.totalorder %s27, 5
      %p87 = scmp.ne.s32.totalorder %s82, %s84
      %p88 = scmp.eq.s32.totalorder %s27, 0
      %p89 = por %p87, %p88
      %p90 = scmp.ne.s32.totalorder %s82, %s84
      %p91 = scmp.eq.s32.totalorder %s32, 5
      %p92 = por %p90, %p91
      %p93 = scmp.ne.s32.totalorder %s84, %s85
      %p94 = scmp.eq.s32.totalorder %s32, 0
      %p95 = por %p93, %p94
      %p96 = scmp.ne.s32.totalorder %s84, %s85
      %p97 = scmp.eq.s32.totalorder %s33, 5
      %p98 = por %p96, %p97
      %p100 = scmp.ne.s32.totalorder %s85, %s99
      %p101 = scmp.eq.s32.totalorder %s33, 0
      %p102 = por %p100, %p101
      %s104 = sadd.s32 %s103, 1
      %p107 = scmp.eq.s32.totalorder %s27, 5
      %p108 = scmp.ne.s32.totalorder %s103, %s105
      %p109 = scmp.eq.s32.totalorder %s27, 0
      %p110 = por %p108, %p109
      %p111 = scmp.ne.s32.totalorder %s103, %s105
      %p112 = scmp.eq.s32.totalorder %s32, 5
      %p113 = por %p111, %p112
      %p114 = scmp.ne.s32.totalorder %s105, %s106
      %p115 = scmp.eq.s32.totalorder %s32, 0
      %p116 = por %p114, %p115
      %p117 = scmp.ne.s32.totalorder %s105, %s106
      %p118 = scmp.eq.s32.totalorder %s33, 5
      %p119 = por %p117, %p118
      %p121 = scmp.ne.s32.totalorder %s106, %s120
      %p122 = scmp.eq.s32.totalorder %s33, 0
      %p123 = por %p121, %p122
      %s125 = sadd.s32 %s124, 1
      %p128 = scmp.eq.s32.totalorder %s27, 5
      %p129 = scmp.ne.s32.totalorder %s124, %s126
      %p130 = scmp.eq.s32.totalorder %s27, 0
      %p131 = por %p129, %p130
      %p132 = scmp.ne.s32.totalorder %s124, %s126
      %p133 = scmp.eq.s32.totalorder %s32, 5
      %p134 = por %p132, %p133
      %p135 = scmp.ne.s32.totalorder %s126, %s127
      %p136 = scmp.eq.s32.totalorder %s32, 0
      %p137 = por %p135, %p136
      %p138 = scmp.ne.s32.totalorder %s126, %s127
      %p139 = scmp.eq.s32.totalorder %s33, 5
      %p140 = por %p138, %p139
      %p142 = scmp.ne.s32.totalorder %s127, %s141
      %p143 = scmp.eq.s32.totalorder %s33, 0
      %p144 = por %p142, %p143
      %s146 = sadd.s32 %s145, 1
      %p149 = scmp.eq.s32.totalorder %s27, 5
      %p150 = scmp.ne.s32.totalorder %s145, %s147
      %p151 = scmp.eq.s32.totalorder %s27, 0
      %p152 = por %p150, %p151
      %p153 = scmp.ne.s32.totalorder %s145, %s147
      %p154 = scmp.eq.s32.totalorder %s32, 5
      %p155 = por %p153, %p154
      %p156 = scmp.ne.s32.totalorder %s147, %s148
      %p157 = scmp.eq.s32.totalorder %s32, 0
      %p158 = por %p156, %p157
      %p159 = scmp.ne.s32.totalorder %s147, %s148
      %p160 = scmp.eq.s32.totalorder %s33, 5
      %p161 = por %p159, %p160
      %p163 = scmp.ne.s32.totalorder %s148, %s162
      %p164 = scmp.eq.s32.totalorder %s33, 0
      %p165 = por %p163, %p164
      %s167 = sadd.s32 %s166, 1
      %p170 = scmp.eq.s32.totalorder %s27, 5
      %p171 = scmp.ne.s32.totalorder %s166, %s168
      %p172 = scmp.eq.s32.totalorder %s27, 0
      %p173 = por %p171, %p172
      %p174 = scmp.ne.s32.totalorder %s166, %s168
      %p175 = scmp.eq.s32.totalorder %s32, 5
      %p176 = por %p174, %p175
      %p177 = scmp.ne.s32.totalorder %s168, %s169
      %p178 = scmp.eq.s32.totalorder %s32, 0
      %p179 = por %p177, %p178
      %p180 = scmp.ne.s32.totalorder %s168, %s169
      %p181 = scmp.eq.s32.totalorder %s33, 5
      %p182 = por %p180, %p181
      %p184 = scmp.ne.s32.totalorder %s169, %s183
      %p185 = scmp.eq.s32.totalorder %s33, 0
      %p186 = por %p184, %p185
      %s188 = sadd.s32 %s187, 1
      %p191 = scmp.eq.s32.totalorder %s27, 5
      %p192 = scmp.ne.s32.totalorder %s187, %s189
      %p193 = scmp.eq.s32.totalorder %s27, 0
      %p194 = por %p192, %p193
      %p195 = scmp.ne.s32.totalorder %s187, %s189
      %p196 = scmp.eq.s32.totalorder %s32, 5
      %p197 = por %p195, %p196
      %p198 = scmp.ne.s32.totalorder %s189, %s190
      %p199 = scmp.eq.s32.totalorder %s32, 0
      %p200 = por %p198, %p199
      %p201 = scmp.ne.s32.totalorder %s189, %s190
      %p202 = scmp.eq.s32.totalorder %s33, 5
      %p203 = por %p201, %p202
      %p205 = scmp.ne.s32.totalorder %s190, %s204
      %p206 = scmp.eq.s32.totalorder %s33, 0
      %p207 = por %p205, %p206
      %s209 = sadd.s32 %s208, 1
      %p212 = scmp.eq.s32.totalorder %s27, 5
      %p213 = scmp.ne.s32.totalorder %s208, %s210
      %p214 = scmp.eq.s32.totalorder %s27, 0
      %p215 = por %p213, %p214
      %p216 = scmp.ne.s32.totalorder %s208, %s210
      %p217 = scmp.eq.s32.totalorder %s32, 5
      %p218 = por %p216, %p217
      %p219 = scmp.ne.s32.totalorder %s210, %s211
      %p220 = scmp.eq.s32.totalorder %s32, 0
      %p221 = por %p219, %p220
      %p222 = scmp.ne.s32.totalorder %s210, %s211
      %p223 = scmp.eq.s32.totalorder %s33, 5
      %p224 = por %p222, %p223
      %p226 = scmp.ne.s32.totalorder %s211, %s225
      %p227 = scmp.eq.s32.totalorder %s33, 0
      %p228 = por %p226, %p227
      %s230 = sadd.s32 %s229, 1
      %p233 = scmp.eq.s32.totalorder %s27, 5
      %p234 = scmp.ne.s32.totalorder %s229, %s231
      %p235 = scmp.eq.s32.totalorder %s27, 0
      %p236 = por %p234, %p235
      %p237 = scmp.ne.s32.totalorder %s229, %s231
      %p238 = scmp.eq.s32.totalorder %s32, 5
      %p239 = por %p237, %p238
      %p240 = scmp.ne.s32.totalorder %s231, %s232
      %p241 = scmp.eq.s32.totalorder %s32, 0
      %p242 = por %p240, %p241
      %p243 = scmp.ne.s32.totalorder %s231, %s232
      %p244 = scmp.eq.s32.totalorder %s33, 5
      %p245 = por %p243, %p244
      %p247 = scmp.ne.s32.totalorder %s232, %s246
      %p248 = scmp.eq.s32.totalorder %s33, 0
      %p249 = por %p247, %p248
      %s251 = sadd.s32 %s250, 1
      %p254 = scmp.eq.s32.totalorder %s27, 5
      %p255 = scmp.ne.s32.totalorder %s250, %s252
      %p256 = scmp.eq.s32.totalorder %s27, 0
      %p257 = por %p255, %p256
      %p258 = scmp.ne.s32.totalorder %s250, %s252
      %p259 = scmp.eq.s32.totalorder %s32, 5
      %p260 = por %p258, %p259
      %p261 = scmp.ne.s32.totalorder %s252, %s253
      %p262 = scmp.eq.s32.totalorder %s32, 0
      %p263 = por %p261, %p262
      %p264 = scmp.ne.s32.totalorder %s252, %s253
      %p265 = scmp.eq.s32.totalorder %s33, 5
      %p266 = por %p264, %p265
      %p268 = scmp.ne.s32.totalorder %s253, %s267
      %p269 = scmp.eq.s32.totalorder %s33, 0
      %p270 = por %p268, %p269
      %s272 = sadd.s32 %s271, 1
      %p275 = scmp.eq.s32.totalorder %s27, 5
      %p276 = scmp.ne.s32.totalorder %s271, %s273
      %p277 = scmp.eq.s32.totalorder %s27, 0
      %p278 = por %p276, %p277
      %p279 = scmp.ne.s32.totalorder %s271, %s273
      %p280 = scmp.eq.s32.totalorder %s32, 5
      %p281 = por %p279, %p280
      %p282 = scmp.ne.s32.totalorder %s273, %s274
      %p283 = scmp.eq.s32.totalorder %s32, 0
      %p284 = por %p282, %p283
      %p285 = scmp.ne.s32.totalorder %s273, %s274
      %p286 = scmp.eq.s32.totalorder %s33, 5
      %p287 = por %p285, %p286
      %p289 = scmp.ne.s32.totalorder %s274, %s288
      %p290 = scmp.eq.s32.totalorder %s33, 0
      %p291 = por %p289, %p290
      %s292 = ssub.s32 %s27, %s34
      %p293 = scmp.eq.s32.totalorder %s292, 0
      %s295 = sadd.s32 %s294, 1
      %s296 = scalar_select %p293, %s294, %s295
      %p299 = pneg %p293
      %p300 = scmp.eq.s32.totalorder %s27, 5
      %p301 = por %p299, %p300
      %p302 = scmp.ne.s32.totalorder %s294, %s297
      %p303 = scmp.eq.s32.totalorder %s27, 0
      %p304 = por %p302, %p303
      %p305 = scmp.ne.s32.totalorder %s294, %s297
      %p306 = scmp.eq.s32.totalorder %s32, 5
      %p307 = por %p305, %p306
      %p308 = scmp.ne.s32.totalorder %s297, %s298
      %p309 = scmp.eq.s32.totalorder %s32, 0
      %p310 = por %p308, %p309
      %p311 = scmp.ne.s32.totalorder %s297, %s298
      %p312 = scmp.eq.s32.totalorder %s33, 5
      %p313 = por %p311, %p312
      %p315 = scmp.ne.s32.totalorder %s298, %s314
      %p316 = scmp.eq.s32.totalorder %s33, 0
      %p317 = por %p315, %p316
      %p318 = scmp.le.s32.totalorder 1, %s27
      %p319 = scmp.lt.s32.totalorder %s27, 7
      %p320 = pnand %p318, %p319
      %p321 = pneg %p320
      // Predicated region
      $region9: #{tpu_custom_call.1} parent=5 // pred_check
        _
      $region10: #{tpu_custom_call.1} parent=5 // pred_check_branch
        %323 = sbr.rel (%p320) target = $region12
      $region11: #{tpu_custom_call.1} parent=5 // pred_region
        %s324 = ssub.s32 %s27, 1
        // Predicated region
        $region13: #{tpu_custom_call.1} parent=11 // pred_check
          %p325 = pneg %p74
        $region14: #{tpu_custom_call.1} parent=11 // pred_check_branch
          %327 = sbr.rel (%p325) target = $region16
        $region15: #{tpu_custom_call.1} parent=11 // pred_region
          %s329 = ssub.s32 2048, 2048
          %330 = vsyncadd [#allocation6], %s329
          %s331 = sshll.u32 [#allocation5], 4
          %s332 = int_to_ptr.vmem [resolvable:$true] %s331
          %337 = dma.hbm_to_vmem [thread:$0]  %s1, 2048, %s332, [#allocation6], 128, 128, 8
        $region16: #{tpu_custom_call.1} parent=11 // pred_fallthru
          _
        // Predicated region
        $region17: #{tpu_custom_call.1} parent=11 // pred_check
          %p338 = pneg %p95
        $region18: #{tpu_custom_call.1} parent=11 // pred_check_branch
          %340 = sbr.rel (%p338) target = $region20
        $region19: #{tpu_custom_call.1} parent=11 // pred_region
          _
        $region20: #{tpu_custom_call.1} parent=11 // pred_fallthru
          _
        // Predicated region
        $region21: #{tpu_custom_call.1} parent=11 // pred_check
          %p341 = pneg %p116
        $region22: #{tpu_custom_call.1} parent=11 // pred_check_branch
          %343 = sbr.rel (%p341) target = $region24
        $region23: #{tpu_custom_call.1} parent=11 // pred_region
          %s345 = ssub.s32 2048, 2048
          %346 = vsyncadd [#allocation6], %s345
          %s347 = sshll.u32 [#allocation7], 4
          %s348 = int_to_ptr.vmem [resolvable:$true] %s347
          %353 = dma.hbm_to_vmem [thread:$0]  %s3, 2048, %s348, [#allocation6], 128, 128, 8
        $region24: #{tpu_custom_call.1} parent=11 // pred_fallthru
          _
        // Predicated region
        $region25: #{tpu_custom_call.1} parent=11 // pred_check
          %p354 = pneg %p137
        $region26: #{tpu_custom_call.1} parent=11 // pred_check_branch
          %356 = sbr.rel (%p354) target = $region28
        $region27: #{tpu_custom_call.1} parent=11 // pred_region
          _
        $region28: #{tpu_custom_call.1} parent=11 // pred_fallthru
          _
        // Predicated region
        $region29: #{tpu_custom_call.1} parent=11 // pred_check
          %p357 = pneg %p158
        $region30: #{tpu_custom_call.1} parent=11 // pred_check_branch
          %359 = sbr.rel (%p357) target = $region32
        $region31: #{tpu_custom_call.1} parent=11 // pred_region
          %s361 = ssub.s32 2048, 2048
          %362 = vsyncadd [#allocation9], %s361
          %s363 = sshll.u32 [#allocation8], 4
          %s364 = int_to_ptr.vmem [resolvable:$true] %s363
          %369 = dma.hbm_to_vmem [thread:$0]  %s5, 2048, %s364, [#allocation9], 128, 128, 8
        $region32: #{tpu_custom_call.1} parent=11 // pred_fallthru
          _
        // Predicated region
        $region33: #{tpu_custom_call.1} parent=11 // pred_check
          %p370 = pneg %p179
        $region34: #{tpu_custom_call.1} parent=11 // pred_check_branch
          %372 = sbr.rel (%p370) target = $region36
        $region35: #{tpu_custom_call.1} parent=11 // pred_region
          %s374 = ssub.s32 2048, 2048
          %375 = vsyncadd [#allocation9], %s374
          %s376 = sshll.u32 [#allocation10], 4
          %s377 = int_to_ptr.vmem [resolvable:$true] %s376
          %382 = dma.hbm_to_vmem [thread:$0]  %s6, 2048, %s377, [#allocation9], 128, 128, 8
        $region36: #{tpu_custom_call.1} parent=11 // pred_fallthru
          _
        // Predicated region
        $region37: #{tpu_custom_call.1} parent=11 // pred_check
          %p383 = pneg %p200
        $region38: #{tpu_custom_call.1} parent=11 // pred_check_branch
          %385 = sbr.rel (%p383) target = $region40
        $region39: #{tpu_custom_call.1} parent=11 // pred_region
          _
        $region40: #{tpu_custom_call.1} parent=11 // pred_fallthru
          _
        // Predicated region
        $region41: #{tpu_custom_call.1} parent=11 // pred_check
          %p386 = pneg %p221
        $region42: #{tpu_custom_call.1} parent=11 // pred_check_branch
          %388 = sbr.rel (%p386) target = $region44
        $region43: #{tpu_custom_call.1} parent=11 // pred_region
          %s390 = ssub.s32 2048, 2048
          %391 = vsyncadd [#allocation12], %s390
          %s392 = sshll.u32 [#allocation11], 4
          %s393 = int_to_ptr.vmem [resolvable:$true] %s392
          %398 = dma.hbm_to_vmem [thread:$0]  %s8, 2048, %s393, [#allocation12], 128, 128, 8
        $region44: #{tpu_custom_call.1} parent=11 // pred_fallthru
          _
        // Predicated region
        $region45: #{tpu_custom_call.1} parent=11 // pred_check
          %p399 = pneg %p242
        $region46: #{tpu_custom_call.1} parent=11 // pred_check_branch
          %401 = sbr.rel (%p399) target = $region48
        $region47: #{tpu_custom_call.1} parent=11 // pred_region
          _
        $region48: #{tpu_custom_call.1} parent=11 // pred_fallthru
          _
        // Predicated region
        $region49: #{tpu_custom_call.1} parent=11 // pred_check
          %p402 = pneg %p263
        $region50: #{tpu_custom_call.1} parent=11 // pred_check_branch
          %404 = sbr.rel (%p402) target = $region52
        $region51: #{tpu_custom_call.1} parent=11 // pred_region
          %s406 = ssub.s32 2048, 2048
          %407 = vsyncadd [#allocation12], %s406
          %s408 = sshll.u32 [#allocation13], 4
          %s409 = int_to_ptr.vmem [resolvable:$true] %s408
          %414 = dma.hbm_to_vmem [thread:$0]  %s10, 2048, %s409, [#allocation12], 128, 128, 8
        $region52: #{tpu_custom_call.1} parent=11 // pred_fallthru
          _
        // Predicated region
        $region53: #{tpu_custom_call.1} parent=11 // pred_check
          %p415 = pneg %p284
        $region54: #{tpu_custom_call.1} parent=11 // pred_check_branch
          %417 = sbr.rel (%p415) target = $region56
        $region55: #{tpu_custom_call.1} parent=11 // pred_region
          _
        $region56: #{tpu_custom_call.1} parent=11 // pred_fallthru
          _
      $region12: #{tpu_custom_call.1} parent=5 // pred_fallthru
        _
      %p418 = scmp.lt.s32.totalorder %s27, 6
      // Predicated region
      $region57: #{tpu_custom_call.1} parent=5 // pred_check
        %p419 = pneg %p418
      $region58: #{tpu_custom_call.1} parent=5 // pred_check_branch
        %421 = sbr.rel (%p419) target = $region60
      $region59: #{tpu_custom_call.1} parent=5 // pred_region
        // Predicated region
        $region61: #{tpu_custom_call.1} parent=59 // pred_check
          %p422 = pneg %p47
        $region62: #{tpu_custom_call.1} parent=59 // pred_check_branch
          %424 = sbr.rel (%p422) target = $region64
        $region63: #{tpu_custom_call.1} parent=59 // pred_region
          %s425 = sand.u32 %s37, 1
          %s426 = scalar_lea.sflag [#allocation3], %s425
          %s427 = sand.u32 %s37, 1
          %s428 = smul.addr %s427, 16
          %s429 = scalar_lea.vmem [#allocation2], %s428
          %s430 = smul.u32 2, %s27
          %s432 = ssub.s32 256, 256
          %433 = vsyncadd %s426, %s432
          %s434 = smul.addr %s430, 128
          %s435 = scalar_lea.hbm %s0, %s434
          %s436 = sshll.u32 %s429, 4
          %s437 = int_to_ptr.vmem [resolvable:$true] %s436
          %442 = dma.hbm_to_vmem [thread:$0]  %s435, 256, %s437, %s426, 128, 128, 8
        $region64: #{tpu_custom_call.1} parent=59 // pred_fallthru
          _
      $region60: #{tpu_custom_call.1} parent=5 // pred_fallthru
        _
      %p443 = scmp.le.s32.totalorder 1, %s27
      %p444 = scmp.lt.s32.totalorder %s27, 7
      %p445 = pnand %p443, %p444
      %p446 = pneg %p445
      // Predicated region
      $region65: #{tpu_custom_call.1} parent=5 // pred_check
        _
      $region66: #{tpu_custom_call.1} parent=5 // pred_check_branch
        %448 = sbr.rel (%p445) target = $region68
      $region67: #{tpu_custom_call.1} parent=5 // pred_region
        %s449 = ssub.s32 %s27, 1
        %s450 = sand.u32 %s40, 1
        %s451 = scalar_lea.sflag [#allocation3], %s450
        %s452 = sand.u32 %s40, 1
        %s453 = smul.addr %s452, 16
        %s454 = scalar_lea.vmem [#allocation2], %s453
        // Predicated region
        $region69: #{tpu_custom_call.1} parent=67 // pred_check
          %p455 = pneg %p53
        $region70: #{tpu_custom_call.1} parent=67 // pred_check_branch
          %457 = sbr.rel (%p455) target = $region72
        $region71: #{tpu_custom_call.1} parent=67 // pred_region
          %458 = dma.done %s451, 256
        $region72: #{tpu_custom_call.1} parent=67 // pred_fallthru
          _
        // Predicated region
        $region73: #{tpu_custom_call.1} parent=67 // pred_check
          %p459 = pneg %p74
        $region74: #{tpu_custom_call.1} parent=67 // pred_check_branch
          %461 = sbr.rel (%p459) target = $region76
        $region75: #{tpu_custom_call.1} parent=67 // pred_region
          %462 = dma.done [#allocation6], 2048
        $region76: #{tpu_custom_call.1} parent=67 // pred_fallthru
          _
        // Predicated region
        $region77: #{tpu_custom_call.1} parent=67 // pred_check
          %p463 = pneg %p116
        $region78: #{tpu_custom_call.1} parent=67 // pred_check_branch
          %465 = sbr.rel (%p463) target = $region80
        $region79: #{tpu_custom_call.1} parent=67 // pred_region
          %466 = dma.done [#allocation6], 2048
        $region80: #{tpu_custom_call.1} parent=67 // pred_fallthru
          _
        // Predicated region
        $region81: #{tpu_custom_call.1} parent=67 // pred_check
          %p467 = pneg %p158
        $region82: #{tpu_custom_call.1} parent=67 // pred_check_branch
          %469 = sbr.rel (%p467) target = $region84
        $region83: #{tpu_custom_call.1} parent=67 // pred_region
          %470 = dma.done [#allocation9], 2048
        $region84: #{tpu_custom_call.1} parent=67 // pred_fallthru
          _
        // Predicated region
        $region85: #{tpu_custom_call.1} parent=67 // pred_check
          %p471 = pneg %p179
        $region86: #{tpu_custom_call.1} parent=67 // pred_check_branch
          %473 = sbr.rel (%p471) target = $region88
        $region87: #{tpu_custom_call.1} parent=67 // pred_region
          %474 = dma.done [#allocation9], 2048
        $region88: #{tpu_custom_call.1} parent=67 // pred_fallthru
          _
        // Predicated region
        $region89: #{tpu_custom_call.1} parent=67 // pred_check
          %p475 = pneg %p221
        $region90: #{tpu_custom_call.1} parent=67 // pred_check_branch
          %477 = sbr.rel (%p475) target = $region92
        $region91: #{tpu_custom_call.1} parent=67 // pred_region
          %478 = dma.done [#allocation12], 2048
        $region92: #{tpu_custom_call.1} parent=67 // pred_fallthru
          _
        // Predicated region
        $region93: #{tpu_custom_call.1} parent=67 // pred_check
          %p479 = pneg %p263
        $region94: #{tpu_custom_call.1} parent=67 // pred_check_branch
          %481 = sbr.rel (%p479) target = $region96
        $region95: #{tpu_custom_call.1} parent=67 // pred_region
          %482 = dma.done [#allocation12], 2048
        $region96: #{tpu_custom_call.1} parent=67 // pred_fallthru
          _
        %s483 = sand.u32 %s40, 1
        %s484 = scalar_lea.sflag [#allocation3], %s483
        %s485 = sand.u32 %s40, 1
        %s486 = smul.addr %s485, 16
        %s487 = scalar_lea.vmem [#allocation2], %s486
        %p488 = pneg %p53
        %p489 = pneg %p50
        %p490 = pneg %p74
        %p491 = pneg %p71
        %p492 = pneg %p95
        %p493 = pneg %p92
        %p494 = pneg %p116
        %p495 = pneg %p113
        %p496 = pneg %p137
        %p497 = pneg %p134
        %p498 = pneg %p158
        %p499 = pneg %p155
        %p500 = pneg %p179
        %p501 = pneg %p176
        %p502 = pneg %p200
        %p503 = pneg %p197
        %p504 = pneg %p221
        %p505 = pneg %p218
        %p506 = pneg %p242
        %p507 = pneg %p239
        %p508 = pneg %p263
        %p509 = pneg %p260
        %p510 = pneg %p284
        %p511 = pneg %p281
        %p512 = pneg %p310
        %p513 = pneg %p307
        %s514 = sand.u32 %s297, 1
        %s515 = scalar_lea.sflag [#allocation4], %s514
        %s516 = sand.u32 %s297, 1
        %s517 = smul.addr %s516, 16
        %s518 = scalar_lea.vmem [#allocation14], %s517
        %s519 = smul.u32 2, %s32
        %s520 = smul.u32 2, %s32
        %v521 = vld [vmem:[%s454] sm:$0xff]
        %v522 = vld [vmem:[%s454 + $0x8] sm:$0xff]
        %v523 = vld [vmem:[#allocation5] sm:$0xff]
        %v524 = vld [vmem:[#allocation5 + $0x8] sm:$0xff]
        %v525 = vld [vmem:[#allocation5 + $0x10] sm:$0xff]
        %v526 = vld [vmem:[#allocation5 + $0x18] sm:$0xff]
        %v527 = vld [vmem:[#allocation5 + $0x20] sm:$0xff]
        %v528 = vld [vmem:[#allocation5 + $0x28] sm:$0xff]
        %v529 = vld [vmem:[#allocation5 + $0x30] sm:$0xff]
        %v530 = vld [vmem:[#allocation5 + $0x38] sm:$0xff]
        %v531 = vld [vmem:[#allocation5 + $0x40] sm:$0xff]
        %v532 = vld [vmem:[#allocation5 + $0x48] sm:$0xff]
        %v533 = vld [vmem:[#allocation5 + $0x50] sm:$0xff]
        %v534 = vld [vmem:[#allocation5 + $0x58] sm:$0xff]
        %v535 = vld [vmem:[#allocation5 + $0x60] sm:$0xff]
        %v536 = vld [vmem:[#allocation5 + $0x68] sm:$0xff]
        %v537 = vld [vmem:[#allocation5 + $0x70] sm:$0xff]
        %v538 = vld [vmem:[#allocation5 + $0x78] sm:$0xff]
        %v539 = vld [vmem:[%s2] sm:$0x1]
        %v541 = vlaneseq
        %v542 = vshrl.u32 %v541, 7
        %v543 = vsub.s32 0, %v542
        %v544 = vrot.slane %v539, %v543
        %546 = vmatprep.subr.mxu0 0.0
        %547 = vmatpush1.msra.mxu0 %v523
        %548 = vmatprep.subr.mxu0 0.0
        %549 = vmatpush1.msra.mxu0 %v524
        %550 = vmatprep.subr.mxu0 0.0
        %551 = vmatpush1.msra.mxu0 %v525
        %552 = vmatprep.subr.mxu0 0.0
        %553 = vmatpush1.msra.mxu0 %v526
        %554 = vmatprep.subr.mxu0 0.0
        %555 = vmatpush1.msra.mxu0 %v527
        %556 = vmatprep.subr.mxu0 0.0
        %557 = vmatpush1.msra.mxu0 %v528
        %558 = vmatprep.subr.mxu0 0.0
        %559 = vmatpush1.msra.mxu0 %v529
        %560 = vmatprep.subr.mxu0 0.0
        %561 = vmatpush1.msra.mxu0 %v530
        %562 = vmatprep.subr.mxu0 0.0
        %563 = vmatpush1.msra.mxu0 %v531
        %564 = vmatprep.subr.mxu0 0.0
        %565 = vmatpush1.msra.mxu0 %v532
        %566 = vmatprep.subr.mxu0 0.0
        %567 = vmatpush1.msra.mxu0 %v533
        %568 = vmatprep.subr.mxu0 0.0
        %569 = vmatpush1.msra.mxu0 %v534
        %570 = vmatprep.subr.mxu0 0.0
        %571 = vmatpush1.msra.mxu0 %v535
        %572 = vmatprep.subr.mxu0 0.0
        %573 = vmatpush1.msra.mxu0 %v536
        %574 = vmatprep.subr.mxu0 0.0
        %575 = vmatpush1.msra.mxu0 %v537
        %576 = vmatprep.subr.mxu0 0.0
        %577 = vmatpush1.msra.mxu0 %v538
        %578 = vmatprep.subr.mxu0 0.0
        %579 = vmatpush1.msra.mxu0 0.0
        %580 = vmatprep.subr.mxu0 0.0
        %581 = vmatpush1.msra.mxu0 0.0
        %582 = vmatprep.subr.mxu0 0.0
        %583 = vmatpush1.msra.mxu0 0.0
        %584 = vmatprep.subr.mxu0 0.0
        %585 = vmatpush1.msra.mxu0 0.0
        %586 = vmatprep.subr.mxu0 0.0
        %587 = vmatpush1.msra.mxu0 0.0
        %588 = vmatprep.subr.mxu0 0.0
        %589 = vmatpush1.msra.mxu0 0.0
        %590 = vmatprep.subr.mxu0 0.0
        %591 = vmatpush1.msra.mxu0 0.0
        %592 = vmatprep.subr.mxu0 0.0
        %593 = vmatpush1.msra.mxu0 0.0
        %594 = vmatprep.subr.mxu0 0.0
        %595 = vmatpush1.msra.mxu0 0.0
        %596 = vmatprep.subr.mxu0 0.0
        %597 = vmatpush1.msra.mxu0 0.0
        %598 = vmatprep.subr.mxu0 0.0
        %599 = vmatpush1.msra.mxu0 0.0
        %600 = vmatprep.subr.mxu0 0.0
        %601 = vmatpush1.msra.mxu0 0.0
        %602 = vmatprep.subr.mxu0 0.0
        %603 = vmatpush1.msra.mxu0 0.0
        %604 = vmatprep.subr.mxu0 0.0
        %605 = vmatpush1.msra.mxu0 0.0
        %606 = vmatprep.subr.mxu0 0.0
        %607 = vmatpush1.msra.mxu0 0.0
        %608 = vmatprep.subr.mxu0 0.0
        %609 = vmatpush1.msra.mxu0 0.0
        %610 = vmatprep.mubr.f32.mxu0 0.0
        %611 = vmatmul.mubr.f32.gmra.mrb[0].mxu0 %v521
        %v612 = vpop.f32.mrb[0].mxu0
        %v613 = vadd.f32 %v544, %v612
        %v614 = vpop.f32.mrb[0].mxu0
        %615 = vmatprep.mubr.f32.mxu0 0.0
        %616 = vmatmul.mubr.f32.gmra.mrb[0].mxu0 %v522
        %v617 = vpop.f32.mrb[0].mxu0
        %v618 = vadd.f32 %v544, %v617
        %v619 = vpop.f32.mrb[0].mxu0
        %620 = vdwg.mxu0
        %v621 = vmul.f32 %v613, 100.0
        %v622 = vmul.f32 %v618, 100.0
        %v623 = vmin.f32 %v621, 20.0
        %v624 = vmin.f32 %v622, 20.0
        %vm625 = vcmp.gt.f32.partialorder %v621, 20.0
        %vm626 = vcmp.gt.f32.partialorder %v622, 20.0
        %v627 = vmul.f32 %v623, 1.442695
        %v628 = vpow.pop %v627
        %v629 = vmul.f32 %v624, 1.442695
        %v630 = vpow.pop %v629
        %v631 = vadd.f32 %v628, 1.0
        %v632 = vlog2.pop %v631
        %v633 = vmul.f32 %v632, 0.6931472
        %v634 = vmul.f32 -0.5, %v628
        %v635 = vadd.f32 %v634, 1.0
        %v636 = vmul.f32 %v635, %v628
        %v637 = vand.u32 2147483647, %v628
        %vm638 = vcmp.lt.f32.partialorder %v637, 0.0004427343
        %v639 = vsel %vm638, %v636, %v633
        %v640 = vadd.f32 %v630, 1.0
        %v641 = vlog2.pop %v640
        %v642 = vmul.f32 %v641, 0.6931472
        %v643 = vmul.f32 -0.5, %v630
        %v644 = vadd.f32 %v643, 1.0
        %v645 = vmul.f32 %v644, %v630
        %v646 = vand.u32 2147483647, %v630
        %vm647 = vcmp.lt.f32.partialorder %v646, 0.0004427343
        %v648 = vsel %vm647, %v645, %v642
        %v649 = vmul.f32 %v639, 0.01
        %v650 = vmul.f32 %v648, 0.01
        %v651 = vsel %vm625, %v613, %v649
        %v652 = vsel %vm626, %v618, %v650
        %v653 = vld [vmem:[#allocation7] sm:$0xff]
        %v654 = vld [vmem:[#allocation7 + $0x8] sm:$0xff]
        %v655 = vld [vmem:[#allocation7 + $0x10] sm:$0xff]
        %v656 = vld [vmem:[#allocation7 + $0x18] sm:$0xff]
        %v657 = vld [vmem:[#allocation7 + $0x20] sm:$0xff]
        %v658 = vld [vmem:[#allocation7 + $0x28] sm:$0xff]
        %v659 = vld [vmem:[#allocation7 + $0x30] sm:$0xff]
        %v660 = vld [vmem:[#allocation7 + $0x38] sm:$0xff]
        %v661 = vld [vmem:[#allocation7 + $0x40] sm:$0xff]
        %v662 = vld [vmem:[#allocation7 + $0x48] sm:$0xff]
        %v663 = vld [vmem:[#allocation7 + $0x50] sm:$0xff]
        %v664 = vld [vmem:[#allocation7 + $0x58] sm:$0xff]
        %v665 = vld [vmem:[#allocation7 + $0x60] sm:$0xff]
        %v666 = vld [vmem:[#allocation7 + $0x68] sm:$0xff]
        %v667 = vld [vmem:[#allocation7 + $0x70] sm:$0xff]
        %v668 = vld [vmem:[#allocation7 + $0x78] sm:$0xff]
        %v669 = vld [vmem:[%s4] sm:$0x1]
        %v671 = vlaneseq
        %v672 = vshrl.u32 %v671, 7
        %v673 = vsub.s32 0, %v672
        %v674 = vrot.slane %v669, %v673
        %676 = vmatprep.subr.mxu0 0.0
        %677 = vmatpush1.msra.mxu0 %v653
        %678 = vmatprep.subr.mxu0 0.0
        %679 = vmatpush1.msra.mxu0 %v654
        %680 = vmatprep.subr.mxu0 0.0
        %681 = vmatpush1.msra.mxu0 %v655
        %682 = vmatprep.subr.mxu0 0.0
        %683 = vmatpush1.msra.mxu0 %v656
        %684 = vmatprep.subr.mxu0 0.0
        %685 = vmatpush1.msra.mxu0 %v657
        %686 = vmatprep.subr.mxu0 0.0
        %687 = vmatpush1.msra.mxu0 %v658
        %688 = vmatprep.subr.mxu0 0.0
        %689 = vmatpush1.msra.mxu0 %v659
        %690 = vmatprep.subr.mxu0 0.0
        %691 = vmatpush1.msra.mxu0 %v660
        %692 = vmatprep.subr.mxu0 0.0
        %693 = vmatpush1.msra.mxu0 %v661
        %694 = vmatprep.subr.mxu0 0.0
        %695 = vmatpush1.msra.mxu0 %v662
        %696 = vmatprep.subr.mxu0 0.0
        %697 = vmatpush1.msra.mxu0 %v663
        %698 = vmatprep.subr.mxu0 0.0
        %699 = vmatpush1.msra.mxu0 %v664
        %700 = vmatprep.subr.mxu0 0.0
        %701 = vmatpush1.msra.mxu0 %v665
        %702 = vmatprep.subr.mxu0 0.0
        %703 = vmatpush1.msra.mxu0 %v666
        %704 = vmatprep.subr.mxu0 0.0
        %705 = vmatpush1.msra.mxu0 %v667
        %706 = vmatprep.subr.mxu0 0.0
        %707 = vmatpush1.msra.mxu0 %v668
        %708 = vmatprep.subr.mxu0 0.0
        %709 = vmatpush1.msra.mxu0 0.0
        %710 = vmatprep.subr.mxu0 0.0
        %711 = vmatpush1.msra.mxu0 0.0
        %712 = vmatprep.subr.mxu0 0.0
        %713 = vmatpush1.msra.mxu0 0.0
        %714 = vmatprep.subr.mxu0 0.0
        %715 = vmatpush1.msra.mxu0 0.0
        %716 = vmatprep.subr.mxu0 0.0
        %717 = vmatpush1.msra.mxu0 0.0
        %718 = vmatprep.subr.mxu0 0.0
        %719 = vmatpush1.msra.mxu0 0.0
        %720 = vmatprep.subr.mxu0 0.0
        %721 = vmatpush1.msra.mxu0 0.0
        %722 = vmatprep.subr.mxu0 0.0
        %723 = vmatpush1.msra.mxu0 0.0
        %724 = vmatprep.subr.mxu0 0.0
        %725 = vmatpush1.msra.mxu0 0.0
        %726 = vmatprep.subr.mxu0 0.0
        %727 = vmatpush1.msra.mxu0 0.0
        %728 = vmatprep.subr.mxu0 0.0
        %729 = vmatpush1.msra.mxu0 0.0
        %730 = vmatprep.subr.mxu0 0.0
        %731 = vmatpush1.msra.mxu0 0.0
        %732 = vmatprep.subr.mxu0 0.0
        %733 = vmatpush1.msra.mxu0 0.0
        %734 = vmatprep.subr.mxu0 0.0
        %735 = vmatpush1.msra.mxu0 0.0
        %736 = vmatprep.subr.mxu0 0.0
        %737 = vmatpush1.msra.mxu0 0.0
        %738 = vmatprep.subr.mxu0 0.0
        %739 = vmatpush1.msra.mxu0 0.0
        %740 = vmatprep.mubr.f32.mxu0 0.0
        %741 = vmatmul.mubr.f32.gmra.mrb[0].mxu0 %v651
        %v742 = vpop.f32.mrb[0].mxu0
        %v743 = vadd.f32 %v674, %v742
        %v744 = vpop.f32.mrb[0].mxu0
        %745 = vmatprep.mubr.f32.mxu0 0.0
        %746 = vmatmul.mubr.f32.gmra.mrb[0].mxu0 %v652
        %v747 = vpop.f32.mrb[0].mxu0
        %v748 = vadd.f32 %v674, %v747
        %v749 = vpop.f32.mrb[0].mxu0
        %750 = vdwg.mxu0
        %v751 = vmul.f32 %v743, 100.0
        %v752 = vmul.f32 %v748, 100.0
        %v753 = vmin.f32 %v751, 20.0
        %v754 = vmin.f32 %v752, 20.0
        %vm755 = vcmp.gt.f32.partialorder %v751, 20.0
        %vm756 = vcmp.gt.f32.partialorder %v752, 20.0
        %v757 = vmul.f32 %v753, 1.442695
        %v758 = vpow.pop %v757
        %v759 = vmul.f32 %v754, 1.442695
        %v760 = vpow.pop %v759
        %v761 = vadd.f32 %v758, 1.0
        %v762 = vlog2.pop %v761
        %v763 = vmul.f32 %v762, 0.6931472
        %v764 = vmul.f32 -0.5, %v758
        %v765 = vadd.f32 %v764, 1.0
        %v766 = vmul.f32 %v765, %v758
        %v767 = vand.u32 2147483647, %v758
        %vm768 = vcmp.lt.f32.partialorder %v767, 0.0004427343
        %v769 = vsel %vm768, %v766, %v763
        %v770 = vadd.f32 %v760, 1.0
        %v771 = vlog2.pop %v770
        %v772 = vmul.f32 %v771, 0.6931472
        %v773 = vmul.f32 -0.5, %v760
        %v774 = vadd.f32 %v773, 1.0
        %v775 = vmul.f32 %v774, %v760
        %v776 = vand.u32 2147483647, %v760
        %vm777 = vcmp.lt.f32.partialorder %v776, 0.0004427343
        %v778 = vsel %vm777, %v775, %v772
        %v779 = vmul.f32 %v769, 0.01
        %v780 = vmul.f32 %v778, 0.01
        %v781 = vsel %vm755, %v743, %v779
        %v782 = vsel %vm756, %v748, %v780
        %v783 = vld [vmem:[#allocation8] sm:$0xff]
        %v784 = vld [vmem:[#allocation8 + $0x8] sm:$0xff]
        %v785 = vld [vmem:[#allocation8 + $0x10] sm:$0xff]
        %v786 = vld [vmem:[#allocation8 + $0x18] sm:$0xff]
        %v787 = vld [vmem:[#allocation8 + $0x20] sm:$0xff]
        %v788 = vld [vmem:[#allocation8 + $0x28] sm:$0xff]
        %v789 = vld [vmem:[#allocation8 + $0x30] sm:$0xff]
        %v790 = vld [vmem:[#allocation8 + $0x38] sm:$0xff]
        %v791 = vld [vmem:[#allocation8 + $0x40] sm:$0xff]
        %v792 = vld [vmem:[#allocation8 + $0x48] sm:$0xff]
        %v793 = vld [vmem:[#allocation8 + $0x50] sm:$0xff]
        %v794 = vld [vmem:[#allocation8 + $0x58] sm:$0xff]
        %v795 = vld [vmem:[#allocation8 + $0x60] sm:$0xff]
        %v796 = vld [vmem:[#allocation8 + $0x68] sm:$0xff]
        %v797 = vld [vmem:[#allocation8 + $0x70] sm:$0xff]
        %v798 = vld [vmem:[#allocation8 + $0x78] sm:$0xff]
        %v799 = vld [vmem:[#allocation10] sm:$0xff]
        %v800 = vld [vmem:[#allocation10 + $0x8] sm:$0xff]
        %v801 = vld [vmem:[#allocation10 + $0x10] sm:$0xff]
        %v802 = vld [vmem:[#allocation10 + $0x18] sm:$0xff]
        %v803 = vld [vmem:[#allocation10 + $0x20] sm:$0xff]
        %v804 = vld [vmem:[#allocation10 + $0x28] sm:$0xff]
        %v805 = vld [vmem:[#allocation10 + $0x30] sm:$0xff]
        %v806 = vld [vmem:[#allocation10 + $0x38] sm:$0xff]
        %v807 = vld [vmem:[#allocation10 + $0x40] sm:$0xff]
        %v808 = vld [vmem:[#allocation10 + $0x48] sm:$0xff]
        %v809 = vld [vmem:[#allocation10 + $0x50] sm:$0xff]
        %v810 = vld [vmem:[#allocation10 + $0x58] sm:$0xff]
        %v811 = vld [vmem:[#allocation10 + $0x60] sm:$0xff]
        %v812 = vld [vmem:[#allocation10 + $0x68] sm:$0xff]
        %v813 = vld [vmem:[#allocation10 + $0x70] sm:$0xff]
        %v814 = vld [vmem:[#allocation10 + $0x78] sm:$0xff]
        %815 = vmatprep.subr.mxu0 0.0
        %816 = vmatpush1.msra.mxu0 %v799
        %817 = vmatprep.subr.mxu0 0.0
        %818 = vmatpush1.msra.mxu0 %v800
        %819 = vmatprep.subr.mxu0 0.0
        %820 = vmatpush1.msra.mxu0 %v801
        %821 = vmatprep.subr.mxu0 0.0
        %822 = vmatpush1.msra.mxu0 %v802
        %823 = vmatprep.subr.mxu0 0.0
        %824 = vmatpush1.msra.mxu0 %v803
        %825 = vmatprep.subr.mxu0 0.0
        %826 = vmatpush1.msra.mxu0 %v804
        %827 = vmatprep.subr.mxu0 0.0
        %828 = vmatpush1.msra.mxu0 %v805
        %829 = vmatprep.subr.mxu0 0.0
        %830 = vmatpush1.msra.mxu0 %v806
        %831 = vmatprep.subr.mxu0 0.0
        %832 = vmatpush1.msra.mxu0 %v807
        %833 = vmatprep.subr.mxu0 0.0
        %834 = vmatpush1.msra.mxu0 %v808
        %835 = vmatprep.subr.mxu0 0.0
        %836 = vmatpush1.msra.mxu0 %v809
        %837 = vmatprep.subr.mxu0 0.0
        %838 = vmatpush1.msra.mxu0 %v810
        %839 = vmatprep.subr.mxu0 0.0
        %840 = vmatpush1.msra.mxu0 %v811
        %841 = vmatprep.subr.mxu0 0.0
        %842 = vmatpush1.msra.mxu0 %v812
        %843 = vmatprep.subr.mxu0 0.0
        %844 = vmatpush1.msra.mxu0 %v813
        %845 = vmatprep.subr.mxu0 0.0
        %846 = vmatpush1.msra.mxu0 %v814
        %847 = vmatprep.subr.mxu0 0.0
        %848 = vmatpush1.msra.mxu0 0.0
        %849 = vmatprep.subr.mxu0 0.0
        %850 = vmatpush1.msra.mxu0 0.0
        %851 = vmatprep.subr.mxu0 0.0
        %852 = vmatpush1.msra.mxu0 0.0
        %853 = vmatprep.subr.mxu0 0.0
        %854 = vmatpush1.msra.mxu0 0.0
        %855 = vmatprep.subr.mxu0 0.0
        %856 = vmatpush1.msra.mxu0 0.0
        %857 = vmatprep.subr.mxu0 0.0
        %858 = vmatpush1.msra.mxu0 0.0
        %859 = vmatprep.subr.mxu0 0.0
        %860 = vmatpush1.msra.mxu0 0.0
        %861 = vmatprep.subr.mxu0 0.0
        %862 = vmatpush1.msra.mxu0 0.0
        %863 = vmatprep.subr.mxu0 0.0
        %864 = vmatpush1.msra.mxu0 0.0
        %865 = vmatprep.subr.mxu0 0.0
        %866 = vmatpush1.msra.mxu0 0.0
        %867 = vmatprep.subr.mxu0 0.0
        %868 = vmatpush1.msra.mxu0 0.0
        %869 = vmatprep.subr.mxu0 0.0
        %870 = vmatpush1.msra.mxu0 0.0
        %871 = vmatprep.subr.mxu0 0.0
        %872 = vmatpush1.msra.mxu0 0.0
        %873 = vmatprep.subr.mxu0 0.0
        %874 = vmatpush1.msra.mxu0 0.0
        %875 = vmatprep.subr.mxu0 0.0
        %876 = vmatpush1.msra.mxu0 0.0
        %877 = vmatprep.subr.mxu0 0.0
        %878 = vmatpush1.msra.mxu0 0.0
        %879 = vmatprep.mubr.f32.mxu0 0.0
        %880 = vmatmul.mubr.f32.gmra.mrb[0].mxu0 %v521
        %v881 = vpop.f32.mrb[0].mxu0
        %v882 = vadd.f32 0.0, %v881
        %v883 = vpop.f32.mrb[0].mxu0
        %884 = vmatprep.mubr.f32.mxu0 0.0
        %885 = vmatmul.mubr.f32.gmra.mrb[0].mxu0 %v522
        %v886 = vpop.f32.mrb[0].mxu0
        %v887 = vadd.f32 0.0, %v886
        %v888 = vpop.f32.mrb[0].mxu0
        %889 = vdwg.mxu0
        %890 = vmatprep.subr.mxu0 0.0
        %891 = vmatpush1.msra.mxu0 %v783
        %892 = vmatprep.subr.mxu0 0.0
        %893 = vmatpush1.msra.mxu0 %v784
        %894 = vmatprep.subr.mxu0 0.0
        %895 = vmatpush1.msra.mxu0 %v785
        %896 = vmatprep.subr.mxu0 0.0
        %897 = vmatpush1.msra.mxu0 %v786
        %898 = vmatprep.subr.mxu0 0.0
        %899 = vmatpush1.msra.mxu0 %v787
        %900 = vmatprep.subr.mxu0 0.0
        %901 = vmatpush1.msra.mxu0 %v788
        %902 = vmatprep.subr.mxu0 0.0
        %903 = vmatpush1.msra.mxu0 %v789
        %904 = vmatprep.subr.mxu0 0.0
        %905 = vmatpush1.msra.mxu0 %v790
        %906 = vmatprep.subr.mxu0 0.0
        %907 = vmatpush1.msra.mxu0 %v791
        %908 = vmatprep.subr.mxu0 0.0
        %909 = vmatpush1.msra.mxu0 %v792
        %910 = vmatprep.subr.mxu0 0.0
        %911 = vmatpush1.msra.mxu0 %v793
        %912 = vmatprep.subr.mxu0 0.0
        %913 = vmatpush1.msra.mxu0 %v794
        %914 = vmatprep.subr.mxu0 0.0
        %915 = vmatpush1.msra.mxu0 %v795
        %916 = vmatprep.subr.mxu0 0.0
        %917 = vmatpush1.msra.mxu0 %v796
        %918 = vmatprep.subr.mxu0 0.0
        %919 = vmatpush1.msra.mxu0 %v797
        %920 = vmatprep.subr.mxu0 0.0
        %921 = vmatpush1.msra.mxu0 %v798
        %922 = vmatprep.subr.mxu0 0.0
        %923 = vmatpush1.msra.mxu0 0.0
        %924 = vmatprep.subr.mxu0 0.0
        %925 = vmatpush1.msra.mxu0 0.0
        %926 = vmatprep.subr.mxu0 0.0
        %927 = vmatpush1.msra.mxu0 0.0
        %928 = vmatprep.subr.mxu0 0.0
        %929 = vmatpush1.msra.mxu0 0.0
        %930 = vmatprep.subr.mxu0 0.0
        %931 = vmatpush1.msra.mxu0 0.0
        %932 = vmatprep.subr.mxu0 0.0
        %933 = vmatpush1.msra.mxu0 0.0
        %934 = vmatprep.subr.mxu0 0.0
        %935 = vmatpush1.msra.mxu0 0.0
        %936 = vmatprep.subr.mxu0 0.0
        %937 = vmatpush1.msra.mxu0 0.0
        %938 = vmatprep.subr.mxu0 0.0
        %939 = vmatpush1.msra.mxu0 0.0
        %940 = vmatprep.subr.mxu0 0.0
        %941 = vmatpush1.msra.mxu0 0.0
        %942 = vmatprep.subr.mxu0 0.0
        %943 = vmatpush1.msra.mxu0 0.0
        %944 = vmatprep.subr.mxu0 0.0
        %945 = vmatpush1.msra.mxu0 0.0
        %946 = vmatprep.subr.mxu0 0.0
        %947 = vmatpush1.msra.mxu0 0.0
        %948 = vmatprep.subr.mxu0 0.0
        %949 = vmatpush1.msra.mxu0 0.0
        %950 = vmatprep.subr.mxu0 0.0
        %951 = vmatpush1.msra.mxu0 0.0
        %952 = vmatprep.subr.mxu0 0.0
        %953 = vmatpush1.msra.mxu0 0.0
        %954 = vmatprep.mubr.f32.mxu0 0.0
        %955 = vmatmul.mubr.f32.gmra.mrb[0].mxu0 %v781
        %v956 = vpop.f32.mrb[0].mxu0
        %v957 = vadd.f32 %v882, %v956
        %v958 = vpop.f32.mrb[0].mxu0
        %959 = vmatprep.mubr.f32.mxu0 0.0
        %960 = vmatmul.mubr.f32.gmra.mrb[0].mxu0 %v782
        %v961 = vpop.f32.mrb[0].mxu0
        %v962 = vadd.f32 %v887, %v961
        %v963 = vpop.f32.mrb[0].mxu0
        %964 = vdwg.mxu0
        %v965 = vld [vmem:[%s7] sm:$0x1]
        %v967 = vlaneseq
        %v968 = vshrl.u32 %v967, 7
        %v969 = vsub.s32 0, %v968
        %v970 = vrot.slane %v965, %v969
        %v972 = vadd.f32 %v957, %v970
        %v973 = vadd.f32 %v962, %v970
        %v974 = vmul.f32 %v972, 100.0
        %v975 = vmul.f32 %v973, 100.0
        %v976 = vmin.f32 %v974, 20.0
        %v977 = vmin.f32 %v975, 20.0
        %vm978 = vcmp.gt.f32.partialorder %v974, 20.0
        %vm979 = vcmp.gt.f32.partialorder %v975, 20.0
        %v980 = vmul.f32 %v976, 1.442695
        %v981 = vpow.pop %v980
        %v982 = vmul.f32 %v977, 1.442695
        %v983 = vpow.pop %v982
        %v984 = vadd.f32 %v981, 1.0
        %v985 = vlog2.pop %v984
        %v986 = vmul.f32 %v985, 0.6931472
        %v987 = vmul.f32 -0.5, %v981
        %v988 = vadd.f32 %v987, 1.0
        %v989 = vmul.f32 %v988, %v981
        %v990 = vand.u32 2147483647, %v981
        %vm991 = vcmp.lt.f32.partialorder %v990, 0.0004427343
        %v992 = vsel %vm991, %v989, %v986
        %v993 = vadd.f32 %v983, 1.0
        %v994 = vlog2.pop %v993
        %v995 = vmul.f32 %v994, 0.6931472
        %v996 = vmul.f32 -0.5, %v983
        %v997 = vadd.f32 %v996, 1.0
        %v998 = vmul.f32 %v997, %v983
        %v999 = vand.u32 2147483647, %v983
        %vm1000 = vcmp.lt.f32.partialorder %v999, 0.0004427343
        %v1001 = vsel %vm1000, %v998, %v995
        %v1002 = vmul.f32 %v992, 0.01
        %v1003 = vmul.f32 %v1001, 0.01
        %v1004 = vsel %vm978, %v972, %v1002
        %v1005 = vsel %vm979, %v973, %v1003
        %v1006 = vld [vmem:[#allocation11] sm:$0xff]
        %v1007 = vld [vmem:[#allocation11 + $0x8] sm:$0xff]
        %v1008 = vld [vmem:[#allocation11 + $0x10] sm:$0xff]
        %v1009 = vld [vmem:[#allocation11 + $0x18] sm:$0xff]
        %v1010 = vld [vmem:[#allocation11 + $0x20] sm:$0xff]
        %v1011 = vld [vmem:[#allocation11 + $0x28] sm:$0xff]
        %v1012 = vld [vmem:[#allocation11 + $0x30] sm:$0xff]
        %v1013 = vld [vmem:[#allocation11 + $0x38] sm:$0xff]
        %v1014 = vld [vmem:[#allocation11 + $0x40] sm:$0xff]
        %v1015 = vld [vmem:[#allocation11 + $0x48] sm:$0xff]
        %v1016 = vld [vmem:[#allocation11 + $0x50] sm:$0xff]
        %v1017 = vld [vmem:[#allocation11 + $0x58] sm:$0xff]
        %v1018 = vld [vmem:[#allocation11 + $0x60] sm:$0xff]
        %v1019 = vld [vmem:[#allocation11 + $0x68] sm:$0xff]
        %v1020 = vld [vmem:[#allocation11 + $0x70] sm:$0xff]
        %v1021 = vld [vmem:[#allocation11 + $0x78] sm:$0xff]
        %v1022 = vld [vmem:[%s9] sm:$0x1]
        %v1024 = vlaneseq
        %v1025 = vshrl.u32 %v1024, 7
        %v1026 = vsub.s32 0, %v1025
        %v1027 = vrot.slane %v1022, %v1026
        %1029 = vmatprep.subr.mxu0 0.0
        %1030 = vmatpush1.msra.mxu0 %v1006
        %1031 = vmatprep.subr.mxu0 0.0
        %1032 = vmatpush1.msra.mxu0 %v1007
        %1033 = vmatprep.subr.mxu0 0.0
        %1034 = vmatpush1.msra.mxu0 %v1008
        %1035 = vmatprep.subr.mxu0 0.0
        %1036 = vmatpush1.msra.mxu0 %v1009
        %1037 = vmatprep.subr.mxu0 0.0
        %1038 = vmatpush1.msra.mxu0 %v1010
        %1039 = vmatprep.subr.mxu0 0.0
        %1040 = vmatpush1.msra.mxu0 %v1011
        %1041 = vmatprep.subr.mxu0 0.0
        %1042 = vmatpush1.msra.mxu0 %v1012
        %1043 = vmatprep.subr.mxu0 0.0
        %1044 = vmatpush1.msra.mxu0 %v1013
        %1045 = vmatprep.subr.mxu0 0.0
        %1046 = vmatpush1.msra.mxu0 %v1014
        %1047 = vmatprep.subr.mxu0 0.0
        %1048 = vmatpush1.msra.mxu0 %v1015
        %1049 = vmatprep.subr.mxu0 0.0
        %1050 = vmatpush1.msra.mxu0 %v1016
        %1051 = vmatprep.subr.mxu0 0.0
        %1052 = vmatpush1.msra.mxu0 %v1017
        %1053 = vmatprep.subr.mxu0 0.0
        %1054 = vmatpush1.msra.mxu0 %v1018
        %1055 = vmatprep.subr.mxu0 0.0
        %1056 = vmatpush1.msra.mxu0 %v1019
        %1057 = vmatprep.subr.mxu0 0.0
        %1058 = vmatpush1.msra.mxu0 %v1020
        %1059 = vmatprep.subr.mxu0 0.0
        %1060 = vmatpush1.msra.mxu0 %v1021
        %1061 = vmatprep.subr.mxu0 0.0
        %1062 = vmatpush1.msra.mxu0 0.0
        %1063 = vmatprep.subr.mxu0 0.0
        %1064 = vmatpush1.msra.mxu0 0.0
        %1065 = vmatprep.subr.mxu0 0.0
        %1066 = vmatpush1.msra.mxu0 0.0
        %1067 = vmatprep.subr.mxu0 0.0
        %1068 = vmatpush1.msra.mxu0 0.0
        %1069 = vmatprep.subr.mxu0 0.0
        %1070 = vmatpush1.msra.mxu0 0.0
        %1071 = vmatprep.subr.mxu0 0.0
        %1072 = vmatpush1.msra.mxu0 0.0
        %1073 = vmatprep.subr.mxu0 0.0
        %1074 = vmatpush1.msra.mxu0 0.0
        %1075 = vmatprep.subr.mxu0 0.0
        %1076 = vmatpush1.msra.mxu0 0.0
        %1077 = vmatprep.subr.mxu0 0.0
        %1078 = vmatpush1.msra.mxu0 0.0
        %1079 = vmatprep.subr.mxu0 0.0
        %1080 = vmatpush1.msra.mxu0 0.0
        %1081 = vmatprep.subr.mxu0 0.0
        %1082 = vmatpush1.msra.mxu0 0.0
        %1083 = vmatprep.subr.mxu0 0.0
        %1084 = vmatpush1.msra.mxu0 0.0
        %1085 = vmatprep.subr.mxu0 0.0
        %1086 = vmatpush1.msra.mxu0 0.0
        %1087 = vmatprep.subr.mxu0 0.0
        %1088 = vmatpush1.msra.mxu0 0.0
        %1089 = vmatprep.subr.mxu0 0.0
        %1090 = vmatpush1.msra.mxu0 0.0
        %1091 = vmatprep.subr.mxu0 0.0
        %1092 = vmatpush1.msra.mxu0 0.0
        %1093 = vmatprep.mubr.f32.mxu0 0.0
        %1094 = vmatmul.mubr.f32.gmra.mrb[0].mxu0 %v1004
        %v1095 = vpop.f32.mrb[0].mxu0
        %v1096 = vadd.f32 %v1027, %v1095
        %v1097 = vpop.f32.mrb[0].mxu0
        %1098 = vmatprep.mubr.f32.mxu0 0.0
        %1099 = vmatmul.mubr.f32.gmra.mrb[0].mxu0 %v1005
        %v1100 = vpop.f32.mrb[0].mxu0
        %v1101 = vadd.f32 %v1027, %v1100
        %v1102 = vpop.f32.mrb[0].mxu0
        %1103 = vdwg.mxu0
        %v1104 = vmul.f32 %v1096, 100.0
        %v1105 = vmul.f32 %v1101, 100.0
        %v1106 = vmin.f32 %v1104, 20.0
        %v1107 = vmin.f32 %v1105, 20.0
        %vm1108 = vcmp.gt.f32.partialorder %v1104, 20.0
        %vm1109 = vcmp.gt.f32.partialorder %v1105, 20.0
        %v1110 = vmul.f32 %v1106, 1.442695
        %v1111 = vpow.pop %v1110
        %v1112 = vmul.f32 %v1107, 1.442695
        %v1113 = vpow.pop %v1112
        %v1114 = vadd.f32 %v1111, 1.0
        %v1115 = vlog2.pop %v1114
        %v1116 = vmul.f32 %v1115, 0.6931472
        %v1117 = vmul.f32 -0.5, %v1111
        %v1118 = vadd.f32 %v1117, 1.0
        %v1119 = vmul.f32 %v1118, %v1111
        %v1120 = vand.u32 2147483647, %v1111
        %vm1121 = vcmp.lt.f32.partialorder %v1120, 0.0004427343
        %v1122 = vsel %vm1121, %v1119, %v1116
        %v1123 = vadd.f32 %v1113, 1.0
        %v1124 = vlog2.pop %v1123
        %v1125 = vmul.f32 %v1124, 0.6931472
        %v1126 = vmul.f32 -0.5, %v1113
        %v1127 = vadd.f32 %v1126, 1.0
        %v1128 = vmul.f32 %v1127, %v1113
        %v1129 = vand.u32 2147483647, %v1113
        %vm1130 = vcmp.lt.f32.partialorder %v1129, 0.0004427343
        %v1131 = vsel %vm1130, %v1128, %v1125
        %v1132 = vmul.f32 %v1122, 0.01
        %v1133 = vmul.f32 %v1131, 0.01
        %v1134 = vsel %vm1108, %v1096, %v1132
        %v1135 = vsel %vm1109, %v1101, %v1133
        %v1136 = vld [vmem:[#allocation13] sm:$0xff]
        %v1137 = vld [vmem:[#allocation13 + $0x8] sm:$0xff]
        %v1138 = vld [vmem:[#allocation13 + $0x10] sm:$0xff]
        %v1139 = vld [vmem:[#allocation13 + $0x18] sm:$0xff]
        %v1140 = vld [vmem:[#allocation13 + $0x20] sm:$0xff]
        %v1141 = vld [vmem:[#allocation13 + $0x28] sm:$0xff]
        %v1142 = vld [vmem:[#allocation13 + $0x30] sm:$0xff]
        %v1143 = vld [vmem:[#allocation13 + $0x38] sm:$0xff]
        %v1144 = vld [vmem:[#allocation13 + $0x40] sm:$0xff]
        %v1145 = vld [vmem:[#allocation13 + $0x48] sm:$0xff]
        %v1146 = vld [vmem:[#allocation13 + $0x50] sm:$0xff]
        %v1147 = vld [vmem:[#allocation13 + $0x58] sm:$0xff]
        %v1148 = vld [vmem:[#allocation13 + $0x60] sm:$0xff]
        %v1149 = vld [vmem:[#allocation13 + $0x68] sm:$0xff]
        %v1150 = vld [vmem:[#allocation13 + $0x70] sm:$0xff]
        %v1151 = vld [vmem:[#allocation13 + $0x78] sm:$0xff]
        %v1152 = vld [vmem:[%s11] sm:$0x1]
        %v1154 = vlaneseq
        %v1155 = vshrl.u32 %v1154, 7
        %v1156 = vsub.s32 0, %v1155
        %v1157 = vrot.slane %v1152, %v1156
        %1159 = vmatprep.subr.mxu0 0.0
        %1160 = vmatpush1.msra.mxu0 %v1136
        %1161 = vmatprep.subr.mxu0 0.0
        %1162 = vmatpush1.msra.mxu0 %v1137
        %1163 = vmatprep.subr.mxu0 0.0
        %1164 = vmatpush1.msra.mxu0 %v1138
        %1165 = vmatprep.subr.mxu0 0.0
        %1166 = vmatpush1.msra.mxu0 %v1139
        %1167 = vmatprep.subr.mxu0 0.0
        %1168 = vmatpush1.msra.mxu0 %v1140
        %1169 = vmatprep.subr.mxu0 0.0
        %1170 = vmatpush1.msra.mxu0 %v1141
        %1171 = vmatprep.subr.mxu0 0.0
        %1172 = vmatpush1.msra.mxu0 %v1142
        %1173 = vmatprep.subr.mxu0 0.0
        %1174 = vmatpush1.msra.mxu0 %v1143
        %1175 = vmatprep.subr.mxu0 0.0
        %1176 = vmatpush1.msra.mxu0 %v1144
        %1177 = vmatprep.subr.mxu0 0.0
        %1178 = vmatpush1.msra.mxu0 %v1145
        %1179 = vmatprep.subr.mxu0 0.0
        %1180 = vmatpush1.msra.mxu0 %v1146
        %1181 = vmatprep.subr.mxu0 0.0
        %1182 = vmatpush1.msra.mxu0 %v1147
        %1183 = vmatprep.subr.mxu0 0.0
        %1184 = vmatpush1.msra.mxu0 %v1148
        %1185 = vmatprep.subr.mxu0 0.0
        %1186 = vmatpush1.msra.mxu0 %v1149
        %1187 = vmatprep.subr.mxu0 0.0
        %1188 = vmatpush1.msra.mxu0 %v1150
        %1189 = vmatprep.subr.mxu0 0.0
        %1190 = vmatpush1.msra.mxu0 %v1151
        %1191 = vmatprep.subr.mxu0 0.0
        %1192 = vmatpush1.msra.mxu0 0.0
        %1193 = vmatprep.subr.mxu0 0.0
        %1194 = vmatpush1.msra.mxu0 0.0
        %1195 = vmatprep.subr.mxu0 0.0
        %1196 = vmatpush1.msra.mxu0 0.0
        %1197 = vmatprep.subr.mxu0 0.0
        %1198 = vmatpush1.msra.mxu0 0.0
        %1199 = vmatprep.subr.mxu0 0.0
        %1200 = vmatpush1.msra.mxu0 0.0
        %1201 = vmatprep.subr.mxu0 0.0
        %1202 = vmatpush1.msra.mxu0 0.0
        %1203 = vmatprep.subr.mxu0 0.0
        %1204 = vmatpush1.msra.mxu0 0.0
        %1205 = vmatprep.subr.mxu0 0.0
        %1206 = vmatpush1.msra.mxu0 0.0
        %1207 = vmatprep.subr.mxu0 0.0
        %1208 = vmatpush1.msra.mxu0 0.0
        %1209 = vmatprep.subr.mxu0 0.0
        %1210 = vmatpush1.msra.mxu0 0.0
        %1211 = vmatprep.subr.mxu0 0.0
        %1212 = vmatpush1.msra.mxu0 0.0
        %1213 = vmatprep.subr.mxu0 0.0
        %1214 = vmatpush1.msra.mxu0 0.0
        %1215 = vmatprep.subr.mxu0 0.0
        %1216 = vmatpush1.msra.mxu0 0.0
        %1217 = vmatprep.subr.mxu0 0.0
        %1218 = vmatpush1.msra.mxu0 0.0
        %1219 = vmatprep.subr.mxu0 0.0
        %1220 = vmatpush1.msra.mxu0 0.0
        %1221 = vmatprep.subr.mxu0 0.0
        %1222 = vmatpush1.msra.mxu0 0.0
        %1223 = vmatprep.mubr.f32.mxu0 0.0
        %1224 = vmatmul.mubr.f32.gmra.mrb[0].mxu0 %v1134
        %v1225 = vpop.f32.mrb[0].mxu0
        %v1226 = vadd.f32 %v1157, %v1225
        %v1227 = vpop.f32.mrb[0].mxu0
        %1228 = vmatprep.mubr.f32.mxu0 0.0
        %1229 = vmatmul.mubr.f32.gmra.mrb[0].mxu0 %v1135
        %v1230 = vpop.f32.mrb[0].mxu0
        %v1231 = vadd.f32 %v1157, %v1230
        %v1232 = vpop.f32.mrb[0].mxu0
        %1233 = vdwg.mxu0
        %1234 = vst [vmem:[%s518] sm:$0xff] %v1226
        %1235 = vst [vmem:[%s518 + $0x8] sm:$0xff] %v1231
        %s1236 = sand.u32 %s297, 1
        %s1237 = scalar_lea.sflag [#allocation4], %s1236
        %s1238 = sand.u32 %s297, 1
        %s1239 = smul.addr %s1238, 16
        %s1240 = scalar_lea.vmem [#allocation14], %s1239
        // Predicated region
        $region97: #{tpu_custom_call.1} parent=67 // pred_check
          %p1241 = pneg %p307
        $region98: #{tpu_custom_call.1} parent=67 // pred_check_branch
          %1243 = sbr.rel (%p1241) target = $region100
        $region99: #{tpu_custom_call.1} parent=67 // pred_region
          %s1244 = smul.u32 2, %s32
          %s1246 = ssub.s32 256, 256
          %1247 = vsyncadd %s1237, %s1246
          %s1248 = smul.addr %s1244, 128
          %s1249 = scalar_lea.hbm %s12, %s1248
          %s1250 = sshll.u32 %s1240, 4
          %s1251 = int_to_ptr.vmem [resolvable:$true] %s1250
          %1256 = dma.vmem_to_hbm [thread:$0]  %s1251, 256, %s1249, %s1237, 128, 128, 8
        $region100: #{tpu_custom_call.1} parent=67 // pred_fallthru
          _
      $region68: #{tpu_custom_call.1} parent=5 // pred_fallthru
        _
      %p1257 = scmp.le.s32.totalorder 2, %s27
      // Predicated region
      $region101: #{tpu_custom_call.1} parent=5 // pred_check
        %p1258 = pneg %p1257
      $region102: #{tpu_custom_call.1} parent=5 // pred_check_branch
        %1260 = sbr.rel (%p1258) target = $region104
      $region103: #{tpu_custom_call.1} parent=5 // pred_region
        %s1261 = ssub.s32 %s27, 2
        // Predicated region
        $region105: #{tpu_custom_call.1} parent=103 // pred_check
          %p1262 = pneg %p313
        $region106: #{tpu_custom_call.1} parent=103 // pred_check_branch
          %1264 = sbr.rel (%p1262) target = $region108
        $region107: #{tpu_custom_call.1} parent=103 // pred_region
          %s1265 = sand.u32 %s298, 1
          %s1266 = scalar_lea.sflag [#allocation4], %s1265
          %s1267 = sand.u32 %s298, 1
          %s1268 = smul.addr %s1267, 16
          %s1269 = scalar_lea.vmem [#allocation14], %s1268
          %1270 = dma.done %s1266, 256
        $region108: #{tpu_custom_call.1} parent=103 // pred_fallthru
          _
      $region104: #{tpu_custom_call.1} parent=5 // pred_fallthru
        _
    $region6: #{tpu_custom_call.1} parent=1 // loop_footer
      %s31 = sadd.s32 1, %s27
    $region7: #{tpu_custom_call.1} parent=1 // loop_footer_branch
      %26 = sbr.rel target = $region3
    $region8: #{tpu_custom_call.1} parent=1 // loop_exit
      _
    %1271 = vsyncpa [#allocation3], 1
    %s1272 = scalar_lea.sflag [#allocation3], 1
    %1273 = vsyncpa %s1272, 1
    %1274 = vsyncpa [#allocation6], 1
    %1275 = vsyncpa [#allocation9], 1
    %1276 = vsyncpa [#allocation12], 1
    %1277 = vsyncpa [#allocation4], 1
    %s1278 = scalar_lea.sflag [#allocation4], 1
    %1279 = vsyncpa %s1278, 1

</llo_original>
